<compile_context>
chip_gen: v5e
topology: v5e:2x2
jax: 0.10.0
libtpu: 0.0.40
codegen_flags: <defaults>
</compile_context>

<pallas_src>
import time
import types
import numpy as np

import jax
import jax.numpy as jnp
from jax.experimental import pallas as pl
from jax.experimental.pallas import tpu as pltpu

K_OPS = 3  # number of candidate "mixed ops" (size of the arch-parameter vector)


# ----------------------------------------------------------------------------
# Fused group kernel: inner adaptation + query accuracies + first-order meta
# gradients for one group of Bt tasks (one grid step = one independent group).
# ----------------------------------------------------------------------------
def _make_group_kernel(update_lr_theta, update_lr_w, update_step):
    S = update_step

    def kernel(theta_ref, w_ref, b_ref, fs_ref, ys_ref, fq_ref, yq_ref,
               gth_ref, gw_ref, gb_ref, cor_ref):
        K, C, M = w_ref.shape
        Bt = fs_ref.shape[0]

        fs = fs_ref[...]          # (Bt, ns, C)  support GAP features
        fq = fq_ref[...]          # (Bt, nq, C)  query GAP features
        ys1h = ys_ref[...]        # (Bt, ns, M)  one-hot support labels
        yq1h = yq_ref[...]        # (Bt, nq, M)  one-hot query labels

        lane_k = jax.lax.broadcasted_iota(jnp.int32, (1, 1, K), 2)
        step_iota = jax.lax.broadcasted_iota(jnp.int32, (1, S + 1), 1)

        # Per-task state, replicated from the shared initialization (each task
        # restarts from theta0 / w0 / b0, as in the original).
        theta = jnp.broadcast_to(theta_ref[...][None], (Bt, 1, K))      # (Bt,1,K)
        w_list = [jnp.broadcast_to(w_ref[k][None], (Bt, C, M)) for k in range(K)]
        b = jnp.broadcast_to(b_ref[...][None], (Bt, 1, M))              # (Bt,1,M)

        def softmax_last(t):                    # stable softmax over arch params
            z = t - jnp.max(t, axis=-1, keepdims=True)
            e = jnp.exp(z)
            return e / jnp.sum(e, axis=-1, keepdims=True)

        def mixed_w(p, wl):                     # W_mix[t] = sum_k p[t,k] * W_k[t]
            wm = p[:, :, 0:1] * wl[0]
            for k in range(1, K):
                wm = wm + p[:, :, k:k + 1] * wl[k]
            return wm                           # (Bt, C, M)

        def head(feats, wm, bias):              # batched classifier logits (MXU)
            return jnp.einsum('tnc,tcm->tnm', feats, wm,
                              preferred_element_type=jnp.float32) + bias

        def ce_grads(feats, logits, y1h, p, wl):
            """Mean cross-entropy grads wrt theta (softmax Jacobian), W_k, b."""
            n = logits.shape[1]
            z = logits - jnp.max(logits, axis=-1, keepdims=True)
            ez = jnp.exp(z)
            probs = ez / jnp.sum(ez, axis=-1, keepdims=True)
            dlogits = (probs - y1h) * (1.0 / n)                          # (Bt,n,M)
            dwm = jnp.einsum('tnc,tnm->tcm', feats, dlogits,
                             preferred_element_type=jnp.float32)          # (Bt,C,M)
            db = jnp.sum(dlogits, axis=1, keepdims=True)                  # (Bt,1,M)
            dw_list = [p[:, :, k:k + 1] * dwm for k in range(K)]          # dL/dW_k
            dp = jnp.zeros((Bt, 1, K), jnp.float32)
            for k in range(K):                                            # dL/dp_k
                dpk = jnp.sum(wl[k] * dwm, axis=-1, keepdims=True)
                dpk = jnp.sum(dpk, axis=-2, keepdims=True)                # (Bt,1,1)
                dp = dp + jnp.where(lane_k == k, dpk, 0.0)
            # chain rule through softmax: dL/dtheta = p * (dp - sum(p*dp))
            dtheta = p * (dp - jnp.sum(p * dp, axis=-1, keepdims=True))
            return dtheta, dw_list, db

        def n_correct(logits, y1h):             # first-argmax == label (scalar sum)
            mx = jnp.max(logits, axis=-1, keepdims=True)
            col = jax.lax.broadcasted_iota(jnp.int32, logits.shape, 2)
            cand = jnp.where(logits == mx, col, logits.shape[-1])
            pred = jnp.min(cand, axis=-1, keepdims=True)
            return jnp.sum(jnp.where(col == pred, y1h, 0.0))

        # ---- query accuracy before any inner update -----------------------------
        p = softmax_last(theta)
        wm = mixed_w(p, w_list)
        logits_q = head(fq, wm, b)
        counts = jnp.where(step_iota == 0, n_correct(logits_q, yq1h), 0.0)

        # ---- inner SGD adaptation (theta and w together), unrolled (S is small) --
        # TODO(synk): switch to lax.fori_loop carrying (theta, w, b) if S grows.
        for j in range(S):
            logits_s = head(fs, wm, b)          # reuses p / wm of current params
            dth, dw_list, db = ce_grads(fs, logits_s, ys1h, p, w_list)
            theta = theta - update_lr_theta * dth
            w_list = [wk - update_lr_w * dwk for wk, dwk in zip(w_list, dw_list)]
            b = b - update_lr_w * db
            p = softmax_last(theta)             # reused for query AND next support
            wm = mixed_w(p, w_list)
            logits_q = head(fq, wm, b)
            counts = counts + jnp.where(step_iota == j + 1,
                                        n_correct(logits_q, yq1h), 0.0)

        # ---- first-order meta gradient: query-loss grads at adapted params ------
        dth_q, dw_list_q, db_q = ce_grads(fq, logits_q, yq1h, p, w_list)

        gth_ref[...] = jnp.sum(dth_q, axis=0)               # (1, K)
        for k in range(K):
            gw_ref[k] = jnp.sum(dw_list_q[k], axis=0)       # (C, M)
        gb_ref[...] = jnp.sum(db_q, axis=0)                 # (1, M)
        cor_ref[...] = counts                               # (1, S+1)

    return kernel


# ----------------------------------------------------------------------------
# Plain-JAX glue: Adam meta-optimizer step (mirrors torch.optim.Adam)
# ----------------------------------------------------------------------------
def adam_step(param, grad, m, v, t, lr, beta1, beta2, eps=1e-8, weight_decay=0.0):
    if weight_decay:
        grad = grad + weight_decay * param
    m = beta1 * m + (1.0 - beta1) * grad
    v = beta2 * v + (1.0 - beta2) * (grad * grad)
    mhat = m / (1.0 - beta1 ** t)
    vhat = v / (1.0 - beta2 ** t)
    param = param - lr * mhat / (jnp.sqrt(vhat) + eps)
    return param, m, v


# ----------------------------------------------------------------------------
# Whole meta step (one fused pallas_call + Adam updates), jitted once.
# ----------------------------------------------------------------------------
def _build_meta_step(args):
    n_way = args.n_way
    S = args.update_step
    kernel = _make_group_kernel(args.update_lr_theta, args.update_lr_w, S)
    mlt, mlw = args.meta_lr_theta, args.meta_lr_w
    awd = args.arch_weight_decay

    def meta_step(theta, w, b, m_th, v_th, m_w, v_w, m_b, v_b, t,
                  x_spt, y_spt, x_qry, y_qry):
        B, ns = x_spt.shape[0], x_spt.shape[1]
        nq = x_qry.shape[1]
        K, C, M = w.shape

        # GAP + one-hot hoisted out of the kernel (trunk is param independent).
        feats_s = jnp.mean(x_spt, axis=(-2, -1)).astype(jnp.float32)     # (B, ns, C)
        feats_q = jnp.mean(x_qry, axis=(-2, -1)).astype(jnp.float32)     # (B, nq, C)
        ys1h = jax.nn.one_hot(y_spt, n_way, dtype=jnp.float32)           # (B, ns, M)
        yq1h = jax.nn.one_hot(y_qry, n_way, dtype=jnp.float32)           # (B, nq, M)

        # Split tasks into G independent groups: amortizes per-grid-step overhead
        # and (leading axis "parallel") lets v7x shard groups across both TCs.
        G = 2 if (B % 2 == 0 and B >= 2) else 1
        Bt = B // G

        gth, gw, gb, counts = pl.pallas_call(
            kernel,
            grid=(G,),
            in_specs=[
                pl.BlockSpec((1, K), lambda i: (0, 0)),                   # theta0
                pl.BlockSpec((K, C, M), lambda i: (0, 0, 0)),             # w0
                pl.BlockSpec((1, M), lambda i: (0, 0)),                   # b0
                pl.BlockSpec((Bt, ns, C), lambda i: (i, 0, 0)),           # support feats
                pl.BlockSpec((Bt, ns, M), lambda i: (i, 0, 0)),           # support 1-hot
                pl.BlockSpec((Bt, nq, C), lambda i: (i, 0, 0)),           # query feats
                pl.BlockSpec((Bt, nq, M), lambda i: (i, 0, 0)),           # query 1-hot
            ],
            out_specs=(
                pl.BlockSpec((None, 1, K), lambda i: (i, 0, 0)),          # grad theta
                pl.BlockSpec((None, K, C, M), lambda i: (i, 0, 0, 0)),    # grad w
                pl.BlockSpec((None, 1, M), lambda i: (i, 0, 0)),          # grad b
                pl.BlockSpec((None, 1, S + 1), lambda i: (i, 0, 0)),      # counts
            ),
            out_shape=(
                jax.ShapeDtypeStruct((G, 1, K), jnp.float32),
                jax.ShapeDtypeStruct((G, K, C, M), jnp.float32),
                jax.ShapeDtypeStruct((G, 1, M), jnp.float32),
                jax.ShapeDtypeStruct((G, 1, S + 1), jnp.float32),
            ),
            compiler_params=pltpu.CompilerParams(
                dimension_semantics=("parallel",)),   # groups are independent
        )(theta, w, b, feats_s, ys1h, feats_q, yq1h)

        inv_b = 1.0 / B
        gth = jnp.sum(gth, axis=0) * inv_b           # (1, K)
        gw = jnp.sum(gw, axis=0) * inv_b             # (K, C, M)
        gb = jnp.sum(gb, axis=0) * inv_b             # (1, M)
        counts = jnp.sum(counts, axis=0)             # (1, S+1)

        t = t + 1
        tf = t.astype(jnp.float32)
        theta, m_th, v_th = adam_step(theta, gth, m_th, v_th, tf, mlt, 0.5, 0.999,
                                      weight_decay=awd)
        w, m_w, v_w = adam_step(w, gw, m_w, v_w, tf, mlw, 0.9, 0.999)
        b, m_b, v_b = adam_step(b, gb, m_b, v_b, tf, mlw, 0.9, 0.999)
        return theta, w, b, m_th, v_th, m_w, v_w, m_b, v_b, t, counts

    return jax.jit(meta_step)


class AverageMeter:
    def __init__(self):
        self.val = 0.0
        self.sum = 0.0
        self.count = 0
        self.avg = 0.0

    def update(self, val, n=1):
        self.val = val
        self.sum += val * n
        self.count += n
        self.avg = self.sum / self.count


# ----------------------------------------------------------------------------
# Meta learner (JAX/Pallas port of Meta.forward -> _update_theta_w_together)
# ----------------------------------------------------------------------------
class MetaPallas:
    def __init__(self, args):
        self.args = args
        self.n_way = args.n_way
        self.meta_batch_size = args.meta_batch_size
        self.update_step = args.update_step

        c, m = args.init_channels, args.n_way
        key = jax.random.PRNGKey(42)
        k1, k2 = jax.random.split(key)
        # arch parameters (theta) and model weights (w, b), deterministic init
        self.theta = 1e-3 * jax.random.normal(k1, (1, K_OPS), jnp.float32)
        self.w = 0.1 * jax.random.normal(k2, (K_OPS, c, m), jnp.float32)
        self.b = jnp.zeros((1, m), jnp.float32)
        # Adam state
        self.t = jnp.zeros((), jnp.int32)
        self.m_theta = jnp.zeros_like(self.theta)
        self.v_theta = jnp.zeros_like(self.theta)
        self.m_w = jnp.zeros_like(self.w)
        self.v_w = jnp.zeros_like(self.w)
        self.m_b = jnp.zeros_like(self.b)
        self.v_b = jnp.zeros_like(self.b)

        self._meta_step = _build_meta_step(args)

    def forward(self, x_spt, y_spt, x_qry, y_qry, update_theta_w_time):
        start = time.time()
        (self.theta, self.w, self.b,
         self.m_theta, self.v_theta, self.m_w, self.v_w, self.m_b, self.v_b,
         self.t, counts) = self._meta_step(
            self.theta, self.w, self.b,
            self.m_theta, self.v_theta, self.m_w, self.v_w, self.m_b, self.v_b,
            self.t, x_spt, y_spt, x_qry, y_qry)
        counts = jax.block_until_ready(counts)        # single host sync per meta step
        meta_batch_size = x_spt.shape[0]
        query_size = x_qry.shape[1]
        accs_w = np.asarray(counts).reshape(-1) / (query_size * meta_batch_size)
        update_theta_w_time.update(time.time() - start)
        return accs_w, update_theta_w_time


# ----------------------------------------------------------------------------
if __name__ == "__main__":
    args = types.SimpleNamespace(
        update_lr_theta=0.01, meta_lr_theta=3e-4,
        update_lr_w=0.01, meta_lr_w=1e-3,
        n_way=4, k_spt=2, k_qry=3,
        meta_batch_size=2, update_step=2, update_step_test=3,
        init_channels=4, layers=2, arch_weight_decay=1e-3)

    B = args.meta_batch_size
    setsz = args.n_way * args.k_spt      # 8
    qsz = args.n_way * args.k_qry        # 12
    C, H, W = args.init_channels, 16, 16

    key = jax.random.PRNGKey(0)
    kx1, ky1, kx2, ky2 = jax.random.split(key, 4)
    x_spt = jax.random.normal(kx1, (B, setsz, C, H, W), jnp.float32)
    y_spt = jax.random.randint(ky1, (B, setsz), 0, args.n_way)
    x_qry = jax.random.normal(kx2, (B, qsz, C, H, W), jnp.float32)
    y_qry = jax.random.randint(ky2, (B, qsz), 0, args.n_way)

    meta = MetaPallas(args)
    timer = AverageMeter()
    accs, timer = meta.forward(x_spt, y_spt, x_qry, y_qry, timer)

    jax.block_until_ready((meta.theta, meta.w, meta.b))
    assert accs.shape == (args.update_step + 1,)
    assert np.all(accs >= 0.0) and np.all(accs <= 1.0)
    print("KERNEL_OK")
</pallas_src>

<mosaic_0001>
module attributes {stable_mosaic.version = 11 : i64} {
  func.func @kernel(%arg0: i32, %arg1: memref<1x3xf32, #tpu.memory_space<vmem>>, %arg2: memref<3x4x4xf32, #tpu.memory_space<vmem>>, %arg3: memref<1x4xf32, #tpu.memory_space<vmem>>, %arg4: memref<1x8x4xf32, #tpu.memory_space<vmem>>, %arg5: memref<1x8x4xf32, #tpu.memory_space<vmem>>, %arg6: memref<1x12x4xf32, #tpu.memory_space<vmem>>, %arg7: memref<1x12x4xf32, #tpu.memory_space<vmem>>, %arg8: memref<1x1x3xf32, #tpu.memory_space<vmem>>, %arg9: memref<1x3x4x4xf32, #tpu.memory_space<vmem>>, %arg10: memref<1x1x4xf32, #tpu.memory_space<vmem>>, %arg11: memref<1x1x3xf32, #tpu.memory_space<vmem>>) attributes {dimension_semantics = [#tpu.dimension_semantics<parallel>], iteration_bounds = array<i64: 2>, scalar_prefetch = 0 : i64, scratch_operands = 0 : i64, tpu.core_type = #tpu.core_type<tc>, window_params = [{pipeline_mode = #tpu.pipeline_mode<synchronous>, transform_indices = @transform_0, window_bounds = array<i64: 1, 3>}, {pipeline_mode = #tpu.pipeline_mode<synchronous>, transform_indices = @transform_1, window_bounds = array<i64: 3, 4, 4>}, {pipeline_mode = #tpu.pipeline_mode<synchronous>, transform_indices = @transform_2, window_bounds = array<i64: 1, 4>}, {transform_indices = @transform_3, window_bounds = array<i64: 1, 8, 4>}, {transform_indices = @transform_4, window_bounds = array<i64: 1, 8, 4>}, {transform_indices = @transform_5, window_bounds = array<i64: 1, 12, 4>}, {transform_indices = @transform_6, window_bounds = array<i64: 1, 12, 4>}, {transform_indices = @transform_7, window_bounds = array<i64: 1, 1, 3>}, {transform_indices = @transform_8, window_bounds = array<i64: 1, 3, 4, 4>}, {transform_indices = @transform_9, window_bounds = array<i64: 1, 1, 4>}, {transform_indices = @transform_10, window_bounds = array<i64: 1, 1, 3>}]} {
    %c0 = arith.constant 0 : index
    %c0_0 = arith.constant 0 : index
    %c0_1 = arith.constant 0 : index
    %0 = vector.load %arg4[%c0, %c0_0, %c0_1] : memref<1x8x4xf32, #tpu.memory_space<vmem>>, vector<1x8x4xf32>
    %c0_2 = arith.constant 0 : index
    %c0_3 = arith.constant 0 : index
    %c0_4 = arith.constant 0 : index
    %1 = vector.load %arg6[%c0_2, %c0_3, %c0_4] : memref<1x12x4xf32, #tpu.memory_space<vmem>>, vector<1x12x4xf32>
    %c0_5 = arith.constant 0 : index
    %c0_6 = arith.constant 0 : index
    %c0_7 = arith.constant 0 : index
    %2 = vector.load %arg5[%c0_5, %c0_6, %c0_7] : memref<1x8x4xf32, #tpu.memory_space<vmem>>, vector<1x8x4xf32>
    %c0_8 = arith.constant 0 : index
    %c0_9 = arith.constant 0 : index
    %c0_10 = arith.constant 0 : index
    %3 = vector.load %arg7[%c0_8, %c0_9, %c0_10] : memref<1x12x4xf32, #tpu.memory_space<vmem>>, vector<1x12x4xf32>
    %4 = tpu.iota {dimensions = array<i32: 2>} : vector<1x1x3xi32>
    %5 = tpu.iota {dimensions = array<i32: 1>} : vector<1x3xi32>
    %c0_11 = arith.constant 0 : index
    %c0_12 = arith.constant 0 : index
    %6 = vector.load %arg1[%c0_11, %c0_12] : memref<1x3xf32, #tpu.memory_space<vmem>>, vector<1x3xf32>
    %7 = vector.shape_cast %6 : vector<1x3xf32> to vector<1x1x3xf32>
    %c0_13 = arith.constant 0 : index
    %c0_14 = arith.constant 0 : index
    %c0_15 = arith.constant 0 : index
    %8 = vector.load %arg2[%c0_13, %c0_14, %c0_15] : memref<3x4x4xf32, #tpu.memory_space<vmem>>, vector<1x4x4xf32>
    %9 = vector.shape_cast %8 : vector<1x4x4xf32> to vector<4x4xf32>
    %10 = vector.shape_cast %9 : vector<4x4xf32> to vector<1x4x4xf32>
    %c1 = arith.constant 1 : index
    %c0_16 = arith.constant 0 : index
    %c0_17 = arith.constant 0 : index
    %11 = vector.load %arg2[%c1, %c0_16, %c0_17] : memref<3x4x4xf32, #tpu.memory_space<vmem>>, vector<1x4x4xf32>
    %12 = vector.shape_cast %11 : vector<1x4x4xf32> to vector<4x4xf32>
    %13 = vector.shape_cast %12 : vector<4x4xf32> to vector<1x4x4xf32>
    %c2 = arith.constant 2 : index
    %c0_18 = arith.constant 0 : index
    %c0_19 = arith.constant 0 : index
    %14 = vector.load %arg2[%c2, %c0_18, %c0_19] : memref<3x4x4xf32, #tpu.memory_space<vmem>>, vector<1x4x4xf32>
    %15 = vector.shape_cast %14 : vector<1x4x4xf32> to vector<4x4xf32>
    %16 = vector.shape_cast %15 : vector<4x4xf32> to vector<1x4x4xf32>
    %c0_20 = arith.constant 0 : index
    %c0_21 = arith.constant 0 : index
    %17 = vector.load %arg3[%c0_20, %c0_21] : memref<1x4xf32, #tpu.memory_space<vmem>>, vector<1x4xf32>
    %18 = vector.shape_cast %17 : vector<1x4xf32> to vector<1x1x4xf32>
    %cst = arith.constant dense<0xFF800000> : vector<1x1xf32>
    %19 = vector.multi_reduction <maximumf>, %7, %cst [2] : vector<1x1x3xf32> to vector<1x1xf32>
    %20 = vector.shape_cast %19 : vector<1x1xf32> to vector<1x1x1xf32>
    %21 = vector.broadcast %20 : vector<1x1x1xf32> to vector<1x1x3xf32>
    %22 = arith.subf %7, %21 : vector<1x1x3xf32>
    %23 = math.exp %22 : vector<1x1x3xf32>
    %cst_22 = arith.constant dense<0.000000e+00> : vector<1x1xf32>
    %24 = vector.multi_reduction <add>, %23, %cst_22 [2] : vector<1x1x3xf32> to vector<1x1xf32>
    %25 = vector.shape_cast %24 : vector<1x1xf32> to vector<1x1x1xf32>
    %26 = vector.broadcast %25 : vector<1x1x1xf32> to vector<1x1x3xf32>
    %27 = arith.divf %23, %26 : vector<1x1x3xf32>
    %28 = vector.extract_strided_slice %27 {offsets = [0, 0, 0], sizes = [1, 1, 1], strides = [1, 1, 1]} : vector<1x1x3xf32> to vector<1x1x1xf32>
    %29 = vector.broadcast %28 : vector<1x1x1xf32> to vector<1x4x4xf32>
    %30 = arith.mulf %29, %10 : vector<1x4x4xf32>
    %31 = vector.extract_strided_slice %27 {offsets = [0, 0, 1], sizes = [1, 1, 1], strides = [1, 1, 1]} : vector<1x1x3xf32> to vector<1x1x1xf32>
    %32 = vector.broadcast %31 : vector<1x1x1xf32> to vector<1x4x4xf32>
    %33 = arith.mulf %32, %13 : vector<1x4x4xf32>
    %34 = arith.addf %30, %33 : vector<1x4x4xf32>
    %35 = vector.extract_strided_slice %27 {offsets = [0, 0, 2], sizes = [1, 1, 1], strides = [1, 1, 1]} : vector<1x1x3xf32> to vector<1x1x1xf32>
    %36 = vector.broadcast %35 : vector<1x1x1xf32> to vector<1x4x4xf32>
    %37 = arith.mulf %36, %16 : vector<1x4x4xf32>
    %38 = arith.addf %34, %37 : vector<1x4x4xf32>
    "tpu.trace_start"() <{level = 10 : i32, message = "tnc,tcm->tnm"}> : () -> ()
    %cst_23 = arith.constant dense<0.000000e+00> : vector<1x12x4xf32>
    %39 = tpu.matmul %1, %38, %cst_23 {dimension_numbers = #tpu.dot_dimension_numbers<[2], [1], [1], [2], [0, 0, 0, 1, 1, 2], [0], [0]>} : vector<1x12x4xf32>, vector<1x4x4xf32>, vector<1x12x4xf32> -> vector<1x12x4xf32>
    "tpu.trace_stop"() : () -> ()
    %40 = vector.broadcast %18 : vector<1x1x4xf32> to vector<1x12x4xf32>
    %41 = arith.addf %39, %40 : vector<1x12x4xf32>
    %c0_i32 = arith.constant 0 : i32
    %42 = vector.broadcast %c0_i32 : i32 to vector<1x3xi32>
    %43 = arith.cmpi eq, %5, %42 : vector<1x3xi32>
    %cst_24 = arith.constant dense<0xFF800000> : vector<1x12xf32>
    %44 = vector.multi_reduction <maximumf>, %41, %cst_24 [2] : vector<1x12x4xf32> to vector<1x12xf32>
    %45 = vector.shape_cast %44 : vector<1x12xf32> to vector<1x12x1xf32>
    %46 = tpu.iota {dimensions = array<i32: 2>} : vector<1x12x4xi32>
    %47 = vector.broadcast %45 : vector<1x12x1xf32> to vector<1x12x4xf32>
    %48 = arith.cmpf oeq, %41, %47 : vector<1x12x4xf32>
    %c4_i32 = arith.constant 4 : i32
    %49 = vector.broadcast %c4_i32 : i32 to vector<1x12x4xi32>
    %50 = arith.select %48, %46, %49 : vector<1x12x4xi1>, vector<1x12x4xi32>
    %cst_25 = arith.constant dense<2147483647> : vector<1x12xi32>
    %51 = vector.multi_reduction <minsi>, %50, %cst_25 [2] : vector<1x12x4xi32> to vector<1x12xi32>
    %52 = vector.shape_cast %51 : vector<1x12xi32> to vector<1x12x1xi32>
    %53 = vector.broadcast %52 : vector<1x12x1xi32> to vector<1x12x4xi32>
    %54 = arith.cmpi eq, %46, %53 : vector<1x12x4xi32>
    %cst_26 = arith.constant 0.000000e+00 : f32
    %55 = vector.broadcast %cst_26 : f32 to vector<1x12x4xf32>
    %56 = arith.select %54, %3, %55 : vector<1x12x4xi1>, vector<1x12x4xf32>
    %57 = vector.shape_cast %56 : vector<1x12x4xf32> to vector<1x1x12x4xf32>
    %cst_27 = arith.constant dense<0.000000e+00> : vector<1xf32>
    %58 = vector.multi_reduction <add>, %57, %cst_27 [1, 2, 3] : vector<1x1x12x4xf32> to vector<1xf32>
    %59 = vector.shape_cast %58 : vector<1xf32> to vector<1x1x1x1xf32>
    %60 = vector.extract %59[0, 0, 0, 0] : f32 from vector<1x1x1x1xf32>
    %cst_28 = arith.constant 0.000000e+00 : f32
    %61 = vector.broadcast %60 : f32 to vector<1x3xf32>
    %62 = vector.broadcast %cst_28 : f32 to vector<1x3xf32>
    %63 = arith.select %43, %61, %62 : vector<1x3xi1>, vector<1x3xf32>
    "tpu.trace_start"() <{level = 10 : i32, message = "tnc,tcm->tnm"}> : () -> ()
    %cst_29 = arith.constant dense<0.000000e+00> : vector<1x8x4xf32>
    %64 = tpu.matmul %0, %38, %cst_29 {dimension_numbers = #tpu.dot_dimension_numbers<[2], [1], [1], [2], [0, 0, 0, 1, 1, 2], [0], [0]>} : vector<1x8x4xf32>, vector<1x4x4xf32>, vector<1x8x4xf32> -> vector<1x8x4xf32>
    "tpu.trace_stop"() : () -> ()
    %65 = vector.broadcast %18 : vector<1x1x4xf32> to vector<1x8x4xf32>
    %66 = arith.addf %64, %65 : vector<1x8x4xf32>
    %cst_30 = arith.constant dense<0xFF800000> : vector<1x8xf32>
    %67 = vector.multi_reduction <maximumf>, %66, %cst_30 [2] : vector<1x8x4xf32> to vector<1x8xf32>
    %68 = vector.shape_cast %67 : vector<1x8xf32> to vector<1x8x1xf32>
    %69 = vector.broadcast %68 : vector<1x8x1xf32> to vector<1x8x4xf32>
    %70 = arith.subf %66, %69 : vector<1x8x4xf32>
    %71 = math.exp %70 : vector<1x8x4xf32>
    %cst_31 = arith.constant dense<0.000000e+00> : vector<1x8xf32>
    %72 = vector.multi_reduction <add>, %71, %cst_31 [2] : vector<1x8x4xf32> to vector<1x8xf32>
    %73 = vector.shape_cast %72 : vector<1x8xf32> to vector<1x8x1xf32>
    %74 = vector.broadcast %73 : vector<1x8x1xf32> to vector<1x8x4xf32>
    %75 = arith.divf %71, %74 : vector<1x8x4xf32>
    %76 = arith.subf %75, %2 : vector<1x8x4xf32>
    %cst_32 = arith.constant 1.250000e-01 : f32
    %77 = vector.broadcast %cst_32 : f32 to vector<1x8x4xf32>
    %78 = arith.mulf %76, %77 : vector<1x8x4xf32>
    "tpu.trace_start"() <{level = 10 : i32, message = "tnc,tnm->tcm"}> : () -> ()
    %cst_33 = arith.constant dense<0.000000e+00> : vector<1x4x4xf32>
    %79 = tpu.matmul %0, %78, %cst_33 {dimension_numbers = #tpu.dot_dimension_numbers<[1], [1], [2], [2], [0, 0, 0, 2, 1, 2], [0], [0]>} : vector<1x8x4xf32>, vector<1x8x4xf32>, vector<1x4x4xf32> -> vector<1x4x4xf32>
    "tpu.trace_stop"() : () -> ()
    %cst_34 = arith.constant dense<0.000000e+00> : vector<1x4xf32>
    %80 = vector.multi_reduction <add>, %78, %cst_34 [1] : vector<1x8x4xf32> to vector<1x4xf32>
    %81 = vector.shape_cast %80 : vector<1x4xf32> to vector<1x1x4xf32>
    %82 = vector.extract_strided_slice %27 {offsets = [0, 0, 0], sizes = [1, 1, 1], strides = [1, 1, 1]} : vector<1x1x3xf32> to vector<1x1x1xf32>
    %83 = vector.broadcast %82 : vector<1x1x1xf32> to vector<1x4x4xf32>
    %84 = arith.mulf %83, %79 : vector<1x4x4xf32>
    %85 = vector.extract_strided_slice %27 {offsets = [0, 0, 1], sizes = [1, 1, 1], strides = [1, 1, 1]} : vector<1x1x3xf32> to vector<1x1x1xf32>
    %86 = vector.broadcast %85 : vector<1x1x1xf32> to vector<1x4x4xf32>
    %87 = arith.mulf %86, %79 : vector<1x4x4xf32>
    %88 = vector.extract_strided_slice %27 {offsets = [0, 0, 2], sizes = [1, 1, 1], strides = [1, 1, 1]} : vector<1x1x3xf32> to vector<1x1x1xf32>
    %89 = vector.broadcast %88 : vector<1x1x1xf32> to vector<1x4x4xf32>
    %90 = arith.mulf %89, %79 : vector<1x4x4xf32>
    %cst_35 = arith.constant 0.000000e+00 : f32
    %91 = vector.broadcast %cst_35 : f32 to vector<1x1x3xf32>
    %92 = arith.mulf %10, %79 : vector<1x4x4xf32>
    %cst_36 = arith.constant dense<0.000000e+00> : vector<1x4xf32>
    %93 = vector.multi_reduction <add>, %92, %cst_36 [2] : vector<1x4x4xf32> to vector<1x4xf32>
    %94 = vector.shape_cast %93 : vector<1x4xf32> to vector<1x4x1xf32>
    %cst_37 = arith.constant dense<0.000000e+00> : vector<1x1xf32>
    %95 = vector.multi_reduction <add>, %94, %cst_37 [1] : vector<1x4x1xf32> to vector<1x1xf32>
    %96 = vector.shape_cast %95 : vector<1x1xf32> to vector<1x1x1xf32>
    %c0_i32_38 = arith.constant 0 : i32
    %97 = vector.broadcast %c0_i32_38 : i32 to vector<1x1x3xi32>
    %98 = arith.cmpi eq, %4, %97 : vector<1x1x3xi32>
    %cst_39 = arith.constant 0.000000e+00 : f32
    %99 = vector.shape_cast %96 : vector<1x1x1xf32> to vector<1x1x1xf32>
    %100 = vector.broadcast %99 : vector<1x1x1xf32> to vector<1x1x3xf32>
    %101 = vector.broadcast %cst_39 : f32 to vector<1x1x3xf32>
    %102 = arith.select %98, %100, %101 : vector<1x1x3xi1>, vector<1x1x3xf32>
    %103 = arith.addf %91, %102 : vector<1x1x3xf32>
    %104 = arith.mulf %13, %79 : vector<1x4x4xf32>
    %cst_40 = arith.constant dense<0.000000e+00> : vector<1x4xf32>
    %105 = vector.multi_reduction <add>, %104, %cst_40 [2] : vector<1x4x4xf32> to vector<1x4xf32>
    %106 = vector.shape_cast %105 : vector<1x4xf32> to vector<1x4x1xf32>
    %cst_41 = arith.constant dense<0.000000e+00> : vector<1x1xf32>
    %107 = vector.multi_reduction <add>, %106, %cst_41 [1] : vector<1x4x1xf32> to vector<1x1xf32>
    %108 = vector.shape_cast %107 : vector<1x1xf32> to vector<1x1x1xf32>
    %c1_i32 = arith.constant 1 : i32
    %109 = vector.broadcast %c1_i32 : i32 to vector<1x1x3xi32>
    %110 = arith.cmpi eq, %4, %109 : vector<1x1x3xi32>
    %cst_42 = arith.constant 0.000000e+00 : f32
    %111 = vector.shape_cast %108 : vector<1x1x1xf32> to vector<1x1x1xf32>
    %112 = vector.broadcast %111 : vector<1x1x1xf32> to vector<1x1x3xf32>
    %113 = vector.broadcast %cst_42 : f32 to vector<1x1x3xf32>
    %114 = arith.select %110, %112, %113 : vector<1x1x3xi1>, vector<1x1x3xf32>
    %115 = arith.addf %103, %114 : vector<1x1x3xf32>
    %116 = arith.mulf %16, %79 : vector<1x4x4xf32>
    %cst_43 = arith.constant dense<0.000000e+00> : vector<1x4xf32>
    %117 = vector.multi_reduction <add>, %116, %cst_43 [2] : vector<1x4x4xf32> to vector<1x4xf32>
    %118 = vector.shape_cast %117 : vector<1x4xf32> to vector<1x4x1xf32>
    %cst_44 = arith.constant dense<0.000000e+00> : vector<1x1xf32>
    %119 = vector.multi_reduction <add>, %118, %cst_44 [1] : vector<1x4x1xf32> to vector<1x1xf32>
    %120 = vector.shape_cast %119 : vector<1x1xf32> to vector<1x1x1xf32>
    %c2_i32 = arith.constant 2 : i32
    %121 = vector.broadcast %c2_i32 : i32 to vector<1x1x3xi32>
    %122 = arith.cmpi eq, %4, %121 : vector<1x1x3xi32>
    %cst_45 = arith.constant 0.000000e+00 : f32
    %123 = vector.shape_cast %120 : vector<1x1x1xf32> to vector<1x1x1xf32>
    %124 = vector.broadcast %123 : vector<1x1x1xf32> to vector<1x1x3xf32>
    %125 = vector.broadcast %cst_45 : f32 to vector<1x1x3xf32>
    %126 = arith.select %122, %124, %125 : vector<1x1x3xi1>, vector<1x1x3xf32>
    %127 = arith.addf %115, %126 : vector<1x1x3xf32>
    %128 = arith.mulf %27, %127 : vector<1x1x3xf32>
    %cst_46 = arith.constant dense<0.000000e+00> : vector<1x1xf32>
    %129 = vector.multi_reduction <add>, %128, %cst_46 [2] : vector<1x1x3xf32> to vector<1x1xf32>
    %130 = vector.shape_cast %129 : vector<1x1xf32> to vector<1x1x1xf32>
    %131 = vector.broadcast %130 : vector<1x1x1xf32> to vector<1x1x3xf32>
    %132 = arith.subf %127, %131 : vector<1x1x3xf32>
    %133 = arith.mulf %27, %132 : vector<1x1x3xf32>
    %cst_47 = arith.constant 0.00999999977 : f32
    %134 = vector.broadcast %cst_47 : f32 to vector<1x1x3xf32>
    %135 = arith.mulf %134, %133 : vector<1x1x3xf32>
    %136 = arith.subf %7, %135 : vector<1x1x3xf32>
    %cst_48 = arith.constant 0.00999999977 : f32
    %137 = vector.broadcast %cst_48 : f32 to vector<1x4x4xf32>
    %138 = arith.mulf %137, %84 : vector<1x4x4xf32>
    %139 = arith.subf %10, %138 : vector<1x4x4xf32>
    %cst_49 = arith.constant 0.00999999977 : f32
    %140 = vector.broadcast %cst_49 : f32 to vector<1x4x4xf32>
    %141 = arith.mulf %140, %87 : vector<1x4x4xf32>
    %142 = arith.subf %13, %141 : vector<1x4x4xf32>
    %cst_50 = arith.constant 0.00999999977 : f32
    %143 = vector.broadcast %cst_50 : f32 to vector<1x4x4xf32>
    %144 = arith.mulf %143, %90 : vector<1x4x4xf32>
    %145 = arith.subf %16, %144 : vector<1x4x4xf32>
    %cst_51 = arith.constant 0.00999999977 : f32
    %146 = vector.broadcast %cst_51 : f32 to vector<1x1x4xf32>
    %147 = arith.mulf %146, %81 : vector<1x1x4xf32>
    %148 = arith.subf %18, %147 : vector<1x1x4xf32>
    %cst_52 = arith.constant dense<0xFF800000> : vector<1x1xf32>
    %149 = vector.multi_reduction <maximumf>, %136, %cst_52 [2] : vector<1x1x3xf32> to vector<1x1xf32>
    %150 = vector.shape_cast %149 : vector<1x1xf32> to vector<1x1x1xf32>
    %151 = vector.broadcast %150 : vector<1x1x1xf32> to vector<1x1x3xf32>
    %152 = arith.subf %136, %151 : vector<1x1x3xf32>
    %153 = math.exp %152 : vector<1x1x3xf32>
    %cst_53 = arith.constant dense<0.000000e+00> : vector<1x1xf32>
    %154 = vector.multi_reduction <add>, %153, %cst_53 [2] : vector<1x1x3xf32> to vector<1x1xf32>
    %155 = vector.shape_cast %154 : vector<1x1xf32> to vector<1x1x1xf32>
    %156 = vector.broadcast %155 : vector<1x1x1xf32> to vector<1x1x3xf32>
    %157 = arith.divf %153, %156 : vector<1x1x3xf32>
    %158 = vector.extract_strided_slice %157 {offsets = [0, 0, 0], sizes = [1, 1, 1], strides = [1, 1, 1]} : vector<1x1x3xf32> to vector<1x1x1xf32>
    %159 = vector.broadcast %158 : vector<1x1x1xf32> to vector<1x4x4xf32>
    %160 = arith.mulf %159, %139 : vector<1x4x4xf32>
    %161 = vector.extract_strided_slice %157 {offsets = [0, 0, 1], sizes = [1, 1, 1], strides = [1, 1, 1]} : vector<1x1x3xf32> to vector<1x1x1xf32>
    %162 = vector.broadcast %161 : vector<1x1x1xf32> to vector<1x4x4xf32>
    %163 = arith.mulf %162, %142 : vector<1x4x4xf32>
    %164 = arith.addf %160, %163 : vector<1x4x4xf32>
    %165 = vector.extract_strided_slice %157 {offsets = [0, 0, 2], sizes = [1, 1, 1], strides = [1, 1, 1]} : vector<1x1x3xf32> to vector<1x1x1xf32>
    %166 = vector.broadcast %165 : vector<1x1x1xf32> to vector<1x4x4xf32>
    %167 = arith.mulf %166, %145 : vector<1x4x4xf32>
    %168 = arith.addf %164, %167 : vector<1x4x4xf32>
    "tpu.trace_start"() <{level = 10 : i32, message = "tnc,tcm->tnm"}> : () -> ()
    %cst_54 = arith.constant dense<0.000000e+00> : vector<1x12x4xf32>
    %169 = tpu.matmul %1, %168, %cst_54 {dimension_numbers = #tpu.dot_dimension_numbers<[2], [1], [1], [2], [0, 0, 0, 1, 1, 2], [0], [0]>} : vector<1x12x4xf32>, vector<1x4x4xf32>, vector<1x12x4xf32> -> vector<1x12x4xf32>
    "tpu.trace_stop"() : () -> ()
    %170 = vector.broadcast %148 : vector<1x1x4xf32> to vector<1x12x4xf32>
    %171 = arith.addf %169, %170 : vector<1x12x4xf32>
    %c1_i32_55 = arith.constant 1 : i32
    %172 = vector.broadcast %c1_i32_55 : i32 to vector<1x3xi32>
    %173 = arith.cmpi eq, %5, %172 : vector<1x3xi32>
    %cst_56 = arith.constant dense<0xFF800000> : vector<1x12xf32>
    %174 = vector.multi_reduction <maximumf>, %171, %cst_56 [2] : vector<1x12x4xf32> to vector<1x12xf32>
    %175 = vector.shape_cast %174 : vector<1x12xf32> to vector<1x12x1xf32>
    %176 = tpu.iota {dimensions = array<i32: 2>} : vector<1x12x4xi32>
    %177 = vector.broadcast %175 : vector<1x12x1xf32> to vector<1x12x4xf32>
    %178 = arith.cmpf oeq, %171, %177 : vector<1x12x4xf32>
    %c4_i32_57 = arith.constant 4 : i32
    %179 = vector.broadcast %c4_i32_57 : i32 to vector<1x12x4xi32>
    %180 = arith.select %178, %176, %179 : vector<1x12x4xi1>, vector<1x12x4xi32>
    %cst_58 = arith.constant dense<2147483647> : vector<1x12xi32>
    %181 = vector.multi_reduction <minsi>, %180, %cst_58 [2] : vector<1x12x4xi32> to vector<1x12xi32>
    %182 = vector.shape_cast %181 : vector<1x12xi32> to vector<1x12x1xi32>
    %183 = vector.broadcast %182 : vector<1x12x1xi32> to vector<1x12x4xi32>
    %184 = arith.cmpi eq, %176, %183 : vector<1x12x4xi32>
    %cst_59 = arith.constant 0.000000e+00 : f32
    %185 = vector.broadcast %cst_59 : f32 to vector<1x12x4xf32>
    %186 = arith.select %184, %3, %185 : vector<1x12x4xi1>, vector<1x12x4xf32>
    %187 = vector.shape_cast %186 : vector<1x12x4xf32> to vector<1x1x12x4xf32>
    %cst_60 = arith.constant dense<0.000000e+00> : vector<1xf32>
    %188 = vector.multi_reduction <add>, %187, %cst_60 [1, 2, 3] : vector<1x1x12x4xf32> to vector<1xf32>
    %189 = vector.shape_cast %188 : vector<1xf32> to vector<1x1x1x1xf32>
    %190 = vector.extract %189[0, 0, 0, 0] : f32 from vector<1x1x1x1xf32>
    %cst_61 = arith.constant 0.000000e+00 : f32
    %191 = vector.broadcast %190 : f32 to vector<1x3xf32>
    %192 = vector.broadcast %cst_61 : f32 to vector<1x3xf32>
    %193 = arith.select %173, %191, %192 : vector<1x3xi1>, vector<1x3xf32>
    %194 = arith.addf %63, %193 : vector<1x3xf32>
    "tpu.trace_start"() <{level = 10 : i32, message = "tnc,tcm->tnm"}> : () -> ()
    %cst_62 = arith.constant dense<0.000000e+00> : vector<1x8x4xf32>
    %195 = tpu.matmul %0, %168, %cst_62 {dimension_numbers = #tpu.dot_dimension_numbers<[2], [1], [1], [2], [0, 0, 0, 1, 1, 2], [0], [0]>} : vector<1x8x4xf32>, vector<1x4x4xf32>, vector<1x8x4xf32> -> vector<1x8x4xf32>
    "tpu.trace_stop"() : () -> ()
    %196 = vector.broadcast %148 : vector<1x1x4xf32> to vector<1x8x4xf32>
    %197 = arith.addf %195, %196 : vector<1x8x4xf32>
    %cst_63 = arith.constant dense<0xFF800000> : vector<1x8xf32>
    %198 = vector.multi_reduction <maximumf>, %197, %cst_63 [2] : vector<1x8x4xf32> to vector<1x8xf32>
    %199 = vector.shape_cast %198 : vector<1x8xf32> to vector<1x8x1xf32>
    %200 = vector.broadcast %199 : vector<1x8x1xf32> to vector<1x8x4xf32>
    %201 = arith.subf %197, %200 : vector<1x8x4xf32>
    %202 = math.exp %201 : vector<1x8x4xf32>
    %cst_64 = arith.constant dense<0.000000e+00> : vector<1x8xf32>
    %203 = vector.multi_reduction <add>, %202, %cst_64 [2] : vector<1x8x4xf32> to vector<1x8xf32>
    %204 = vector.shape_cast %203 : vector<1x8xf32> to vector<1x8x1xf32>
    %205 = vector.broadcast %204 : vector<1x8x1xf32> to vector<1x8x4xf32>
    %206 = arith.divf %202, %205 : vector<1x8x4xf32>
    %207 = arith.subf %206, %2 : vector<1x8x4xf32>
    %cst_65 = arith.constant 1.250000e-01 : f32
    %208 = vector.broadcast %cst_65 : f32 to vector<1x8x4xf32>
    %209 = arith.mulf %207, %208 : vector<1x8x4xf32>
    "tpu.trace_start"() <{level = 10 : i32, message = "tnc,tnm->tcm"}> : () -> ()
    %cst_66 = arith.constant dense<0.000000e+00> : vector<1x4x4xf32>
    %210 = tpu.matmul %0, %209, %cst_66 {dimension_numbers = #tpu.dot_dimension_numbers<[1], [1], [2], [2], [0, 0, 0, 2, 1, 2], [0], [0]>} : vector<1x8x4xf32>, vector<1x8x4xf32>, vector<1x4x4xf32> -> vector<1x4x4xf32>
    "tpu.trace_stop"() : () -> ()
    %cst_67 = arith.constant dense<0.000000e+00> : vector<1x4xf32>
    %211 = vector.multi_reduction <add>, %209, %cst_67 [1] : vector<1x8x4xf32> to vector<1x4xf32>
    %212 = vector.shape_cast %211 : vector<1x4xf32> to vector<1x1x4xf32>
    %213 = vector.extract_strided_slice %157 {offsets = [0, 0, 0], sizes = [1, 1, 1], strides = [1, 1, 1]} : vector<1x1x3xf32> to vector<1x1x1xf32>
    %214 = vector.broadcast %213 : vector<1x1x1xf32> to vector<1x4x4xf32>
    %215 = arith.mulf %214, %210 : vector<1x4x4xf32>
    %216 = vector.extract_strided_slice %157 {offsets = [0, 0, 1], sizes = [1, 1, 1], strides = [1, 1, 1]} : vector<1x1x3xf32> to vector<1x1x1xf32>
    %217 = vector.broadcast %216 : vector<1x1x1xf32> to vector<1x4x4xf32>
    %218 = arith.mulf %217, %210 : vector<1x4x4xf32>
    %219 = vector.extract_strided_slice %157 {offsets = [0, 0, 2], sizes = [1, 1, 1], strides = [1, 1, 1]} : vector<1x1x3xf32> to vector<1x1x1xf32>
    %220 = vector.broadcast %219 : vector<1x1x1xf32> to vector<1x4x4xf32>
    %221 = arith.mulf %220, %210 : vector<1x4x4xf32>
    %cst_68 = arith.constant 0.000000e+00 : f32
    %222 = vector.broadcast %cst_68 : f32 to vector<1x1x3xf32>
    %223 = arith.mulf %139, %210 : vector<1x4x4xf32>
    %cst_69 = arith.constant dense<0.000000e+00> : vector<1x4xf32>
    %224 = vector.multi_reduction <add>, %223, %cst_69 [2] : vector<1x4x4xf32> to vector<1x4xf32>
    %225 = vector.shape_cast %224 : vector<1x4xf32> to vector<1x4x1xf32>
    %cst_70 = arith.constant dense<0.000000e+00> : vector<1x1xf32>
    %226 = vector.multi_reduction <add>, %225, %cst_70 [1] : vector<1x4x1xf32> to vector<1x1xf32>
    %227 = vector.shape_cast %226 : vector<1x1xf32> to vector<1x1x1xf32>
    %c0_i32_71 = arith.constant 0 : i32
    %228 = vector.broadcast %c0_i32_71 : i32 to vector<1x1x3xi32>
    %229 = arith.cmpi eq, %4, %228 : vector<1x1x3xi32>
    %cst_72 = arith.constant 0.000000e+00 : f32
    %230 = vector.shape_cast %227 : vector<1x1x1xf32> to vector<1x1x1xf32>
    %231 = vector.broadcast %230 : vector<1x1x1xf32> to vector<1x1x3xf32>
    %232 = vector.broadcast %cst_72 : f32 to vector<1x1x3xf32>
    %233 = arith.select %229, %231, %232 : vector<1x1x3xi1>, vector<1x1x3xf32>
    %234 = arith.addf %222, %233 : vector<1x1x3xf32>
    %235 = arith.mulf %142, %210 : vector<1x4x4xf32>
    %cst_73 = arith.constant dense<0.000000e+00> : vector<1x4xf32>
    %236 = vector.multi_reduction <add>, %235, %cst_73 [2] : vector<1x4x4xf32> to vector<1x4xf32>
    %237 = vector.shape_cast %236 : vector<1x4xf32> to vector<1x4x1xf32>
    %cst_74 = arith.constant dense<0.000000e+00> : vector<1x1xf32>
    %238 = vector.multi_reduction <add>, %237, %cst_74 [1] : vector<1x4x1xf32> to vector<1x1xf32>
    %239 = vector.shape_cast %238 : vector<1x1xf32> to vector<1x1x1xf32>
    %c1_i32_75 = arith.constant 1 : i32
    %240 = vector.broadcast %c1_i32_75 : i32 to vector<1x1x3xi32>
    %241 = arith.cmpi eq, %4, %240 : vector<1x1x3xi32>
    %cst_76 = arith.constant 0.000000e+00 : f32
    %242 = vector.shape_cast %239 : vector<1x1x1xf32> to vector<1x1x1xf32>
    %243 = vector.broadcast %242 : vector<1x1x1xf32> to vector<1x1x3xf32>
    %244 = vector.broadcast %cst_76 : f32 to vector<1x1x3xf32>
    %245 = arith.select %241, %243, %244 : vector<1x1x3xi1>, vector<1x1x3xf32>
    %246 = arith.addf %234, %245 : vector<1x1x3xf32>
    %247 = arith.mulf %145, %210 : vector<1x4x4xf32>
    %cst_77 = arith.constant dense<0.000000e+00> : vector<1x4xf32>
    %248 = vector.multi_reduction <add>, %247, %cst_77 [2] : vector<1x4x4xf32> to vector<1x4xf32>
    %249 = vector.shape_cast %248 : vector<1x4xf32> to vector<1x4x1xf32>
    %cst_78 = arith.constant dense<0.000000e+00> : vector<1x1xf32>
    %250 = vector.multi_reduction <add>, %249, %cst_78 [1] : vector<1x4x1xf32> to vector<1x1xf32>
    %251 = vector.shape_cast %250 : vector<1x1xf32> to vector<1x1x1xf32>
    %c2_i32_79 = arith.constant 2 : i32
    %252 = vector.broadcast %c2_i32_79 : i32 to vector<1x1x3xi32>
    %253 = arith.cmpi eq, %4, %252 : vector<1x1x3xi32>
    %cst_80 = arith.constant 0.000000e+00 : f32
    %254 = vector.shape_cast %251 : vector<1x1x1xf32> to vector<1x1x1xf32>
    %255 = vector.broadcast %254 : vector<1x1x1xf32> to vector<1x1x3xf32>
    %256 = vector.broadcast %cst_80 : f32 to vector<1x1x3xf32>
    %257 = arith.select %253, %255, %256 : vector<1x1x3xi1>, vector<1x1x3xf32>
    %258 = arith.addf %246, %257 : vector<1x1x3xf32>
    %259 = arith.mulf %157, %258 : vector<1x1x3xf32>
    %cst_81 = arith.constant dense<0.000000e+00> : vector<1x1xf32>
    %260 = vector.multi_reduction <add>, %259, %cst_81 [2] : vector<1x1x3xf32> to vector<1x1xf32>
    %261 = vector.shape_cast %260 : vector<1x1xf32> to vector<1x1x1xf32>
    %262 = vector.broadcast %261 : vector<1x1x1xf32> to vector<1x1x3xf32>
    %263 = arith.subf %258, %262 : vector<1x1x3xf32>
    %264 = arith.mulf %157, %263 : vector<1x1x3xf32>
    %cst_82 = arith.constant 0.00999999977 : f32
    %265 = vector.broadcast %cst_82 : f32 to vector<1x1x3xf32>
    %266 = arith.mulf %265, %264 : vector<1x1x3xf32>
    %267 = arith.subf %136, %266 : vector<1x1x3xf32>
    %cst_83 = arith.constant 0.00999999977 : f32
    %268 = vector.broadcast %cst_83 : f32 to vector<1x4x4xf32>
    %269 = arith.mulf %268, %215 : vector<1x4x4xf32>
    %270 = arith.subf %139, %269 : vector<1x4x4xf32>
    %cst_84 = arith.constant 0.00999999977 : f32
    %271 = vector.broadcast %cst_84 : f32 to vector<1x4x4xf32>
    %272 = arith.mulf %271, %218 : vector<1x4x4xf32>
    %273 = arith.subf %142, %272 : vector<1x4x4xf32>
    %cst_85 = arith.constant 0.00999999977 : f32
    %274 = vector.broadcast %cst_85 : f32 to vector<1x4x4xf32>
    %275 = arith.mulf %274, %221 : vector<1x4x4xf32>
    %276 = arith.subf %145, %275 : vector<1x4x4xf32>
    %cst_86 = arith.constant 0.00999999977 : f32
    %277 = vector.broadcast %cst_86 : f32 to vector<1x1x4xf32>
    %278 = arith.mulf %277, %212 : vector<1x1x4xf32>
    %279 = arith.subf %148, %278 : vector<1x1x4xf32>
    %cst_87 = arith.constant dense<0xFF800000> : vector<1x1xf32>
    %280 = vector.multi_reduction <maximumf>, %267, %cst_87 [2] : vector<1x1x3xf32> to vector<1x1xf32>
    %281 = vector.shape_cast %280 : vector<1x1xf32> to vector<1x1x1xf32>
    %282 = vector.broadcast %281 : vector<1x1x1xf32> to vector<1x1x3xf32>
    %283 = arith.subf %267, %282 : vector<1x1x3xf32>
    %284 = math.exp %283 : vector<1x1x3xf32>
    %cst_88 = arith.constant dense<0.000000e+00> : vector<1x1xf32>
    %285 = vector.multi_reduction <add>, %284, %cst_88 [2] : vector<1x1x3xf32> to vector<1x1xf32>
    %286 = vector.shape_cast %285 : vector<1x1xf32> to vector<1x1x1xf32>
    %287 = vector.broadcast %286 : vector<1x1x1xf32> to vector<1x1x3xf32>
    %288 = arith.divf %284, %287 : vector<1x1x3xf32>
    %289 = vector.extract_strided_slice %288 {offsets = [0, 0, 0], sizes = [1, 1, 1], strides = [1, 1, 1]} : vector<1x1x3xf32> to vector<1x1x1xf32>
    %290 = vector.broadcast %289 : vector<1x1x1xf32> to vector<1x4x4xf32>
    %291 = arith.mulf %290, %270 : vector<1x4x4xf32>
    %292 = vector.extract_strided_slice %288 {offsets = [0, 0, 1], sizes = [1, 1, 1], strides = [1, 1, 1]} : vector<1x1x3xf32> to vector<1x1x1xf32>
    %293 = vector.broadcast %292 : vector<1x1x1xf32> to vector<1x4x4xf32>
    %294 = arith.mulf %293, %273 : vector<1x4x4xf32>
    %295 = arith.addf %291, %294 : vector<1x4x4xf32>
    %296 = vector.extract_strided_slice %288 {offsets = [0, 0, 2], sizes = [1, 1, 1], strides = [1, 1, 1]} : vector<1x1x3xf32> to vector<1x1x1xf32>
    %297 = vector.broadcast %296 : vector<1x1x1xf32> to vector<1x4x4xf32>
    %298 = arith.mulf %297, %276 : vector<1x4x4xf32>
    %299 = arith.addf %295, %298 : vector<1x4x4xf32>
    "tpu.trace_start"() <{level = 10 : i32, message = "tnc,tcm->tnm"}> : () -> ()
    %cst_89 = arith.constant dense<0.000000e+00> : vector<1x12x4xf32>
    %300 = tpu.matmul %1, %299, %cst_89 {dimension_numbers = #tpu.dot_dimension_numbers<[2], [1], [1], [2], [0, 0, 0, 1, 1, 2], [0], [0]>} : vector<1x12x4xf32>, vector<1x4x4xf32>, vector<1x12x4xf32> -> vector<1x12x4xf32>
    "tpu.trace_stop"() : () -> ()
    %301 = vector.broadcast %279 : vector<1x1x4xf32> to vector<1x12x4xf32>
    %302 = arith.addf %300, %301 : vector<1x12x4xf32>
    %c2_i32_90 = arith.constant 2 : i32
    %303 = vector.broadcast %c2_i32_90 : i32 to vector<1x3xi32>
    %304 = arith.cmpi eq, %5, %303 : vector<1x3xi32>
    %cst_91 = arith.constant dense<0xFF800000> : vector<1x12xf32>
    %305 = vector.multi_reduction <maximumf>, %302, %cst_91 [2] : vector<1x12x4xf32> to vector<1x12xf32>
    %306 = vector.shape_cast %305 : vector<1x12xf32> to vector<1x12x1xf32>
    %307 = tpu.iota {dimensions = array<i32: 2>} : vector<1x12x4xi32>
    %308 = vector.broadcast %306 : vector<1x12x1xf32> to vector<1x12x4xf32>
    %309 = arith.cmpf oeq, %302, %308 : vector<1x12x4xf32>
    %c4_i32_92 = arith.constant 4 : i32
    %310 = vector.broadcast %c4_i32_92 : i32 to vector<1x12x4xi32>
    %311 = arith.select %309, %307, %310 : vector<1x12x4xi1>, vector<1x12x4xi32>
    %cst_93 = arith.constant dense<2147483647> : vector<1x12xi32>
    %312 = vector.multi_reduction <minsi>, %311, %cst_93 [2] : vector<1x12x4xi32> to vector<1x12xi32>
    %313 = vector.shape_cast %312 : vector<1x12xi32> to vector<1x12x1xi32>
    %314 = vector.broadcast %313 : vector<1x12x1xi32> to vector<1x12x4xi32>
    %315 = arith.cmpi eq, %307, %314 : vector<1x12x4xi32>
    %cst_94 = arith.constant 0.000000e+00 : f32
    %316 = vector.broadcast %cst_94 : f32 to vector<1x12x4xf32>
    %317 = arith.select %315, %3, %316 : vector<1x12x4xi1>, vector<1x12x4xf32>
    %318 = vector.shape_cast %317 : vector<1x12x4xf32> to vector<1x1x12x4xf32>
    %cst_95 = arith.constant dense<0.000000e+00> : vector<1xf32>
    %319 = vector.multi_reduction <add>, %318, %cst_95 [1, 2, 3] : vector<1x1x12x4xf32> to vector<1xf32>
    %320 = vector.shape_cast %319 : vector<1xf32> to vector<1x1x1x1xf32>
    %321 = vector.extract %320[0, 0, 0, 0] : f32 from vector<1x1x1x1xf32>
    %cst_96 = arith.constant 0.000000e+00 : f32
    %322 = vector.broadcast %321 : f32 to vector<1x3xf32>
    %323 = vector.broadcast %cst_96 : f32 to vector<1x3xf32>
    %324 = arith.select %304, %322, %323 : vector<1x3xi1>, vector<1x3xf32>
    %325 = arith.addf %194, %324 : vector<1x3xf32>
    %cst_97 = arith.constant dense<0xFF800000> : vector<1x12xf32>
    %326 = vector.multi_reduction <maximumf>, %302, %cst_97 [2] : vector<1x12x4xf32> to vector<1x12xf32>
    %327 = vector.shape_cast %326 : vector<1x12xf32> to vector<1x12x1xf32>
    %328 = vector.broadcast %327 : vector<1x12x1xf32> to vector<1x12x4xf32>
    %329 = arith.subf %302, %328 : vector<1x12x4xf32>
    %330 = math.exp %329 : vector<1x12x4xf32>
    %cst_98 = arith.constant dense<0.000000e+00> : vector<1x12xf32>
    %331 = vector.multi_reduction <add>, %330, %cst_98 [2] : vector<1x12x4xf32> to vector<1x12xf32>
    %332 = vector.shape_cast %331 : vector<1x12xf32> to vector<1x12x1xf32>
    %333 = vector.broadcast %332 : vector<1x12x1xf32> to vector<1x12x4xf32>
    %334 = arith.divf %330, %333 : vector<1x12x4xf32>
    %335 = arith.subf %334, %3 : vector<1x12x4xf32>
    %cst_99 = arith.constant 0.0833333358 : f32
    %336 = vector.broadcast %cst_99 : f32 to vector<1x12x4xf32>
    %337 = arith.mulf %335, %336 : vector<1x12x4xf32>
    "tpu.trace_start"() <{level = 10 : i32, message = "tnc,tnm->tcm"}> : () -> ()
    %cst_100 = arith.constant dense<0.000000e+00> : vector<1x4x4xf32>
    %338 = tpu.matmul %1, %337, %cst_100 {dimension_numbers = #tpu.dot_dimension_numbers<[1], [1], [2], [2], [0, 0, 0, 2, 1, 2], [0], [0]>} : vector<1x12x4xf32>, vector<1x12x4xf32>, vector<1x4x4xf32> -> vector<1x4x4xf32>
    "tpu.trace_stop"() : () -> ()
    %cst_101 = arith.constant dense<0.000000e+00> : vector<1x4xf32>
    %339 = vector.multi_reduction <add>, %337, %cst_101 [1] : vector<1x12x4xf32> to vector<1x4xf32>
    %340 = vector.shape_cast %339 : vector<1x4xf32> to vector<1x1x4xf32>
    %341 = vector.extract_strided_slice %288 {offsets = [0, 0, 0], sizes = [1, 1, 1], strides = [1, 1, 1]} : vector<1x1x3xf32> to vector<1x1x1xf32>
    %342 = vector.broadcast %341 : vector<1x1x1xf32> to vector<1x4x4xf32>
    %343 = arith.mulf %342, %338 : vector<1x4x4xf32>
    %344 = vector.extract_strided_slice %288 {offsets = [0, 0, 1], sizes = [1, 1, 1], strides = [1, 1, 1]} : vector<1x1x3xf32> to vector<1x1x1xf32>
    %345 = vector.broadcast %344 : vector<1x1x1xf32> to vector<1x4x4xf32>
    %346 = arith.mulf %345, %338 : vector<1x4x4xf32>
    %347 = vector.extract_strided_slice %288 {offsets = [0, 0, 2], sizes = [1, 1, 1], strides = [1, 1, 1]} : vector<1x1x3xf32> to vector<1x1x1xf32>
    %348 = vector.broadcast %347 : vector<1x1x1xf32> to vector<1x4x4xf32>
    %349 = arith.mulf %348, %338 : vector<1x4x4xf32>
    %cst_102 = arith.constant 0.000000e+00 : f32
    %350 = vector.broadcast %cst_102 : f32 to vector<1x1x3xf32>
    %351 = arith.mulf %270, %338 : vector<1x4x4xf32>
    %cst_103 = arith.constant dense<0.000000e+00> : vector<1x4xf32>
    %352 = vector.multi_reduction <add>, %351, %cst_103 [2] : vector<1x4x4xf32> to vector<1x4xf32>
    %353 = vector.shape_cast %352 : vector<1x4xf32> to vector<1x4x1xf32>
    %cst_104 = arith.constant dense<0.000000e+00> : vector<1x1xf32>
    %354 = vector.multi_reduction <add>, %353, %cst_104 [1] : vector<1x4x1xf32> to vector<1x1xf32>
    %355 = vector.shape_cast %354 : vector<1x1xf32> to vector<1x1x1xf32>
    %c0_i32_105 = arith.constant 0 : i32
    %356 = vector.broadcast %c0_i32_105 : i32 to vector<1x1x3xi32>
    %357 = arith.cmpi eq, %4, %356 : vector<1x1x3xi32>
    %cst_106 = arith.constant 0.000000e+00 : f32
    %358 = vector.shape_cast %355 : vector<1x1x1xf32> to vector<1x1x1xf32>
    %359 = vector.broadcast %358 : vector<1x1x1xf32> to vector<1x1x3xf32>
    %360 = vector.broadcast %cst_106 : f32 to vector<1x1x3xf32>
    %361 = arith.select %357, %359, %360 : vector<1x1x3xi1>, vector<1x1x3xf32>
    %362 = arith.addf %350, %361 : vector<1x1x3xf32>
    %363 = arith.mulf %273, %338 : vector<1x4x4xf32>
    %cst_107 = arith.constant dense<0.000000e+00> : vector<1x4xf32>
    %364 = vector.multi_reduction <add>, %363, %cst_107 [2] : vector<1x4x4xf32> to vector<1x4xf32>
    %365 = vector.shape_cast %364 : vector<1x4xf32> to vector<1x4x1xf32>
    %cst_108 = arith.constant dense<0.000000e+00> : vector<1x1xf32>
    %366 = vector.multi_reduction <add>, %365, %cst_108 [1] : vector<1x4x1xf32> to vector<1x1xf32>
    %367 = vector.shape_cast %366 : vector<1x1xf32> to vector<1x1x1xf32>
    %c1_i32_109 = arith.constant 1 : i32
    %368 = vector.broadcast %c1_i32_109 : i32 to vector<1x1x3xi32>
    %369 = arith.cmpi eq, %4, %368 : vector<1x1x3xi32>
    %cst_110 = arith.constant 0.000000e+00 : f32
    %370 = vector.shape_cast %367 : vector<1x1x1xf32> to vector<1x1x1xf32>
    %371 = vector.broadcast %370 : vector<1x1x1xf32> to vector<1x1x3xf32>
    %372 = vector.broadcast %cst_110 : f32 to vector<1x1x3xf32>
    %373 = arith.select %369, %371, %372 : vector<1x1x3xi1>, vector<1x1x3xf32>
    %374 = arith.addf %362, %373 : vector<1x1x3xf32>
    %375 = arith.mulf %276, %338 : vector<1x4x4xf32>
    %cst_111 = arith.constant dense<0.000000e+00> : vector<1x4xf32>
    %376 = vector.multi_reduction <add>, %375, %cst_111 [2] : vector<1x4x4xf32> to vector<1x4xf32>
    %377 = vector.shape_cast %376 : vector<1x4xf32> to vector<1x4x1xf32>
    %cst_112 = arith.constant dense<0.000000e+00> : vector<1x1xf32>
    %378 = vector.multi_reduction <add>, %377, %cst_112 [1] : vector<1x4x1xf32> to vector<1x1xf32>
    %379 = vector.shape_cast %378 : vector<1x1xf32> to vector<1x1x1xf32>
    %c2_i32_113 = arith.constant 2 : i32
    %380 = vector.broadcast %c2_i32_113 : i32 to vector<1x1x3xi32>
    %381 = arith.cmpi eq, %4, %380 : vector<1x1x3xi32>
    %cst_114 = arith.constant 0.000000e+00 : f32
    %382 = vector.shape_cast %379 : vector<1x1x1xf32> to vector<1x1x1xf32>
    %383 = vector.broadcast %382 : vector<1x1x1xf32> to vector<1x1x3xf32>
    %384 = vector.broadcast %cst_114 : f32 to vector<1x1x3xf32>
    %385 = arith.select %381, %383, %384 : vector<1x1x3xi1>, vector<1x1x3xf32>
    %386 = arith.addf %374, %385 : vector<1x1x3xf32>
    %387 = arith.mulf %288, %386 : vector<1x1x3xf32>
    %cst_115 = arith.constant dense<0.000000e+00> : vector<1x1xf32>
    %388 = vector.multi_reduction <add>, %387, %cst_115 [2] : vector<1x1x3xf32> to vector<1x1xf32>
    %389 = vector.shape_cast %388 : vector<1x1xf32> to vector<1x1x1xf32>
    %390 = vector.broadcast %389 : vector<1x1x1xf32> to vector<1x1x3xf32>
    %391 = arith.subf %386, %390 : vector<1x1x3xf32>
    %392 = arith.mulf %288, %391 : vector<1x1x3xf32>
    %cst_116 = arith.constant dense<0.000000e+00> : vector<1x3xf32>
    %393 = vector.multi_reduction <add>, %392, %cst_116 [0] : vector<1x1x3xf32> to vector<1x3xf32>
    %c0_117 = arith.constant 0 : index
    %c0_118 = arith.constant 0 : index
    %c0_119 = arith.constant 0 : index
    %394 = vector.load %arg8[%c0_117, %c0_118, %c0_119] : memref<1x1x3xf32, #tpu.memory_space<vmem>>, vector<1x1x3xf32>
    %395 = vector.shape_cast %394 : vector<1x1x3xf32> to vector<1x3xf32>
    %396 = vector.shape_cast %393 : vector<1x3xf32> to vector<1x1x3xf32>
    tpu.vector_store %arg8[%c0_117, %c0_118, %c0_119], %396 {strides = array<i32>} : memref<1x1x3xf32, #tpu.memory_space<vmem>>, vector<1x1x3xf32>,
    %cst_120 = arith.constant dense<0.000000e+00> : vector<4x4xf32>
    %397 = vector.multi_reduction <add>, %343, %cst_120 [0] : vector<1x4x4xf32> to vector<4x4xf32>
    %c0_121 = arith.constant 0 : index
    %c0_122 = arith.constant 0 : index
    %c0_123 = arith.constant 0 : index
    %c0_124 = arith.constant 0 : index
    %398 = vector.load %arg9[%c0_121, %c0_122, %c0_123, %c0_124] : memref<1x3x4x4xf32, #tpu.memory_space<vmem>>, vector<1x1x4x4xf32>
    %399 = vector.shape_cast %398 : vector<1x1x4x4xf32> to vector<4x4xf32>
    %400 = vector.shape_cast %397 : vector<4x4xf32> to vector<1x1x4x4xf32>
    tpu.vector_store %arg9[%c0_121, %c0_122, %c0_123, %c0_124], %400 {strides = array<i32>} : memref<1x3x4x4xf32, #tpu.memory_space<vmem>>, vector<1x1x4x4xf32>,
    %cst_125 = arith.constant dense<0.000000e+00> : vector<4x4xf32>
    %401 = vector.multi_reduction <add>, %346, %cst_125 [0] : vector<1x4x4xf32> to vector<4x4xf32>
    %c0_126 = arith.constant 0 : index
    %c1_127 = arith.constant 1 : index
    %c0_128 = arith.constant 0 : index
    %c0_129 = arith.constant 0 : index
    %402 = vector.load %arg9[%c0_126, %c1_127, %c0_128, %c0_129] : memref<1x3x4x4xf32, #tpu.memory_space<vmem>>, vector<1x1x4x4xf32>
    %403 = vector.shape_cast %402 : vector<1x1x4x4xf32> to vector<4x4xf32>
    %404 = vector.shape_cast %401 : vector<4x4xf32> to vector<1x1x4x4xf32>
    tpu.vector_store %arg9[%c0_126, %c1_127, %c0_128, %c0_129], %404 {strides = array<i32>} : memref<1x3x4x4xf32, #tpu.memory_space<vmem>>, vector<1x1x4x4xf32>,
    %cst_130 = arith.constant dense<0.000000e+00> : vector<4x4xf32>
    %405 = vector.multi_reduction <add>, %349, %cst_130 [0] : vector<1x4x4xf32> to vector<4x4xf32>
    %c0_131 = arith.constant 0 : index
    %c2_132 = arith.constant 2 : index
    %c0_133 = arith.constant 0 : index
    %c0_134 = arith.constant 0 : index
    %406 = vector.load %arg9[%c0_131, %c2_132, %c0_133, %c0_134] : memref<1x3x4x4xf32, #tpu.memory_space<vmem>>, vector<1x1x4x4xf32>
    %407 = vector.shape_cast %406 : vector<1x1x4x4xf32> to vector<4x4xf32>
    %408 = vector.shape_cast %405 : vector<4x4xf32> to vector<1x1x4x4xf32>
    tpu.vector_store %arg9[%c0_131, %c2_132, %c0_133, %c0_134], %408 {strides = array<i32>} : memref<1x3x4x4xf32, #tpu.memory_space<vmem>>, vector<1x1x4x4xf32>,
    %cst_135 = arith.constant dense<0.000000e+00> : vector<1x4xf32>
    %409 = vector.multi_reduction <add>, %340, %cst_135 [0] : vector<1x1x4xf32> to vector<1x4xf32>
    %c0_136 = arith.constant 0 : index
    %c0_137 = arith.constant 0 : index
    %c0_138 = arith.constant 0 : index
    %410 = vector.load %arg10[%c0_136, %c0_137, %c0_138] : memref<1x1x4xf32, #tpu.memory_space<vmem>>, vector<1x1x4xf32>
    %411 = vector.shape_cast %410 : vector<1x1x4xf32> to vector<1x4xf32>
    %412 = vector.shape_cast %409 : vector<1x4xf32> to vector<1x1x4xf32>
    tpu.vector_store %arg10[%c0_136, %c0_137, %c0_138], %412 {strides = array<i32>} : memref<1x1x4xf32, #tpu.memory_space<vmem>>, vector<1x1x4xf32>,
    %c0_139 = arith.constant 0 : index
    %c0_140 = arith.constant 0 : index
    %c0_141 = arith.constant 0 : index
    %413 = vector.load %arg11[%c0_139, %c0_140, %c0_141] : memref<1x1x3xf32, #tpu.memory_space<vmem>>, vector<1x1x3xf32>
    %414 = vector.shape_cast %413 : vector<1x1x3xf32> to vector<1x3xf32>
    %415 = vector.shape_cast %325 : vector<1x3xf32> to vector<1x1x3xf32>
    tpu.vector_store %arg11[%c0_139, %c0_140, %c0_141], %415 {strides = array<i32>} : memref<1x1x3xf32, #tpu.memory_space<vmem>>, vector<1x1x3xf32>,
    return
  }
  func.func @transform_0(%arg0: i32) -> (i32, i32) {
    %c0_i32 = arith.constant 0 : i32
    %c0_i32_0 = arith.constant 0 : i32
    %c0_i32_1 = arith.constant 0 : i32
    return %c0_i32, %c0_i32_0 : i32, i32
  }
  func.func @transform_1(%arg0: i32) -> (i32, i32, i32) {
    %c0_i32 = arith.constant 0 : i32
    %c0_i32_0 = arith.constant 0 : i32
    %c0_i32_1 = arith.constant 0 : i32
    %c0_i32_2 = arith.constant 0 : i32
    return %c0_i32, %c0_i32_0, %c0_i32_1 : i32, i32, i32
  }
  func.func @transform_2(%arg0: i32) -> (i32, i32) {
    %c0_i32 = arith.constant 0 : i32
    %c0_i32_0 = arith.constant 0 : i32
    %c0_i32_1 = arith.constant 0 : i32
    return %c0_i32, %c0_i32_0 : i32, i32
  }
  func.func @transform_3(%arg0: i32) -> (i32, i32, i32) {
    %c0_i32 = arith.constant 0 : i32
    %c0_i32_0 = arith.constant 0 : i32
    %c0_i32_1 = arith.constant 0 : i32
    return %arg0, %c0_i32, %c0_i32_0 : i32, i32, i32
  }
  func.func @transform_4(%arg0: i32) -> (i32, i32, i32) {
    %c0_i32 = arith.constant 0 : i32
    %c0_i32_0 = arith.constant 0 : i32
    %c0_i32_1 = arith.constant 0 : i32
    return %arg0, %c0_i32, %c0_i32_0 : i32, i32, i32
  }
  func.func @transform_5(%arg0: i32) -> (i32, i32, i32) {
    %c0_i32 = arith.constant 0 : i32
    %c0_i32_0 = arith.constant 0 : i32
    %c0_i32_1 = arith.constant 0 : i32
    return %arg0, %c0_i32, %c0_i32_0 : i32, i32, i32
  }
  func.func @transform_6(%arg0: i32) -> (i32, i32, i32) {
    %c0_i32 = arith.constant 0 : i32
    %c0_i32_0 = arith.constant 0 : i32
    %c0_i32_1 = arith.constant 0 : i32
    return %arg0, %c0_i32, %c0_i32_0 : i32, i32, i32
  }
  func.func @transform_7(%arg0: i32) -> (i32, i32, i32) {
    %c0_i32 = arith.constant 0 : i32
    %c0_i32_0 = arith.constant 0 : i32
    %c0_i32_1 = arith.constant 0 : i32
    return %arg0, %c0_i32, %c0_i32_0 : i32, i32, i32
  }
  func.func @transform_8(%arg0: i32) -> (i32, i32, i32, i32) {
    %c0_i32 = arith.constant 0 : i32
    %c0_i32_0 = arith.constant 0 : i32
    %c0_i32_1 = arith.constant 0 : i32
    %c0_i32_2 = arith.constant 0 : i32
    return %arg0, %c0_i32, %c0_i32_0, %c0_i32_1 : i32, i32, i32, i32
  }
  func.func @transform_9(%arg0: i32) -> (i32, i32, i32) {
    %c0_i32 = arith.constant 0 : i32
    %c0_i32_0 = arith.constant 0 : i32
    %c0_i32_1 = arith.constant 0 : i32
    return %arg0, %c0_i32, %c0_i32_0 : i32, i32, i32
  }
  func.func @transform_10(%arg0: i32) -> (i32, i32, i32) {
    %c0_i32 = arith.constant 0 : i32
    %c0_i32_0 = arith.constant 0 : i32
    %c0_i32_1 = arith.constant 0 : i32
    return %arg0, %c0_i32, %c0_i32_0 : i32, i32, i32
  }
}

</mosaic_0001>

<llo_original>
// kernel: meta_step.1
$region0: #{meta_step.1}
  #allocation0 [shape = 'u32[]', space=smem, size = 0x4, offset = 0x4, fixed_abs, tag = 'smem constant byte address 0x4 - core index']
  #allocation1 [shape = 'u32[72,128]{1,0:T(1,128)}', space=vmem, size = 0x9000, scoped, tag = 'internal scratch']
  %s0 = inlined_call_operand.vmem [shape: f32[1,3], index: 0, kind: input, shape index: {}]
  %s1 = inlined_call_operand.vmem [shape: f32[3,4,4], index: 1, kind: input, shape index: {}]
  %s2 = inlined_call_operand.vmem [shape: f32[1,4], index: 2, kind: input, shape index: {}]
  %s3 = inlined_call_operand.vmem [shape: f32[2,8,4], index: 3, kind: input, shape index: {}]
  %s4 = inlined_call_operand.vmem [shape: f32[2,8,4], index: 4, kind: input, shape index: {}]
  %s5 = inlined_call_operand.vmem [shape: f32[2,12,4], index: 5, kind: input, shape index: {}]
  %s6 = inlined_call_operand.vmem [shape: f32[2,12,4], index: 6, kind: input, shape index: {}]
  %s7 = inlined_call_operand.vmem [shape: f32[2,1,3], index: 7, kind: output, shape index: {0}]
  %s8 = inlined_call_operand.vmem [shape: f32[2,3,4,4], index: 8, kind: output, shape index: {1}]
  %s9 = inlined_call_operand.vmem [shape: f32[2,1,4], index: 9, kind: output, shape index: {2}]
  %s10 = inlined_call_operand.vmem [shape: f32[2,1,3], index: 10, kind: output, shape index: {3}]
  %11 = xla_tuple %s7, %s8, %s9, %s10
  %s12 = sld [smem:[#allocation0]]
  $region85: #{meta_step.1} parent=0
    _
  %s14 = ssub.s32 1, %s12
  %s15 = scalar_select 0, %s14, %s12
  loop: start=0, step=1, limit=4
  $region2: #{meta_step.1} parent=0 // loop_pre_header
    _
  $region3: #{meta_step.1} parent=0 // loop_header
    %s17 = sphi 0, %s21
    %p18 = scmp.ge.s32.totalorder %s17, 4
    %s25 = sphi 0, %s25
    %s27 = sphi 0, %s25
    %s28 = sphi 0, %s27
    %s42 = sphi 0, %s28
    %s46 = sphi 0, %s46
    %s48 = sphi 0, %s46
    %s49 = sphi 0, %s48
    %s63 = sphi 0, %s49
    %s67 = sphi 0, %s67
    %s69 = sphi 0, %s67
    %s70 = sphi 0, %s69
    %s84 = sphi 0, %s70
    %s90 = sphi 0, %s92
    %s93 = sphi 0, %s90
    %s94 = sphi 0, %s93
    %s110 = sphi 0, %s94
    %s116 = sphi 0, %s118
    %s119 = sphi 0, %s116
    %s120 = sphi 0, %s119
    %s136 = sphi 0, %s120
    %s142 = sphi 0, %s144
    %s145 = sphi 0, %s142
    %s146 = sphi 0, %s145
    %s162 = sphi 0, %s146
    %s168 = sphi 0, %s170
    %s171 = sphi 0, %s168
    %s172 = sphi 0, %s171
    %s188 = sphi 0, %s172
    %s194 = sphi 0, %s196
    %s197 = sphi 0, %s194
    %s198 = sphi 0, %s197
    %s214 = sphi 0, %s198
    %s220 = sphi 0, %s222
    %s223 = sphi 0, %s220
    %s224 = sphi 0, %s223
    %s240 = sphi 0, %s224
    %s246 = sphi 0, %s248
    %s249 = sphi 0, %s246
    %s250 = sphi 0, %s249
    %s266 = sphi 0, %s250
    %s272 = sphi 0, %s274
    %s275 = sphi 0, %s272
    %s276 = sphi 0, %s275
    %s292 = sphi 0, %s276
  $region4: #{meta_step.1} parent=0 // loop_header_branch
    %20 = sbr.rel (%p18) target = $region8
  $region5: #{meta_step.1} parent=0 // loop_body
    %s22 = ssub.s32 %s17, 1
    %s23 = ssub.s32 %s17, 2
    %s24 = sadd.s32 %s17, 1
    %s26 = sadd.s32 %s25, 1
    %p29 = scmp.eq.s32.totalorder %s17, 1
    %p30 = scmp.ne.s32.totalorder %s25, %s27
    %p31 = scmp.eq.s32.totalorder %s17, 0
    %p32 = por %p30, %p31
    %p33 = scmp.ne.s32.totalorder %s25, %s27
    %p34 = scmp.eq.s32.totalorder %s22, 1
    %p35 = por %p33, %p34
    %p36 = scmp.ne.s32.totalorder %s27, %s28
    %p37 = scmp.eq.s32.totalorder %s22, 0
    %p38 = por %p36, %p37
    %p39 = scmp.ne.s32.totalorder %s27, %s28
    %p40 = scmp.eq.s32.totalorder %s23, 1
    %p41 = por %p39, %p40
    %p43 = scmp.ne.s32.totalorder %s28, %s42
    %p44 = scmp.eq.s32.totalorder %s23, 0
    %p45 = por %p43, %p44
    %s47 = sadd.s32 %s46, 1
    %p50 = scmp.eq.s32.totalorder %s17, 1
    %p51 = scmp.ne.s32.totalorder %s46, %s48
    %p52 = scmp.eq.s32.totalorder %s17, 0
    %p53 = por %p51, %p52
    %p54 = scmp.ne.s32.totalorder %s46, %s48
    %p55 = scmp.eq.s32.totalorder %s22, 1
    %p56 = por %p54, %p55
    %p57 = scmp.ne.s32.totalorder %s48, %s49
    %p58 = scmp.eq.s32.totalorder %s22, 0
    %p59 = por %p57, %p58
    %p60 = scmp.ne.s32.totalorder %s48, %s49
    %p61 = scmp.eq.s32.totalorder %s23, 1
    %p62 = por %p60, %p61
    %p64 = scmp.ne.s32.totalorder %s49, %s63
    %p65 = scmp.eq.s32.totalorder %s23, 0
    %p66 = por %p64, %p65
    %s68 = sadd.s32 %s67, 1
    %p71 = scmp.eq.s32.totalorder %s17, 1
    %p72 = scmp.ne.s32.totalorder %s67, %s69
    %p73 = scmp.eq.s32.totalorder %s17, 0
    %p74 = por %p72, %p73
    %p75 = scmp.ne.s32.totalorder %s67, %s69
    %p76 = scmp.eq.s32.totalorder %s22, 1
    %p77 = por %p75, %p76
    %p78 = scmp.ne.s32.totalorder %s69, %s70
    %p79 = scmp.eq.s32.totalorder %s22, 0
    %p80 = por %p78, %p79
    %p81 = scmp.ne.s32.totalorder %s69, %s70
    %p82 = scmp.eq.s32.totalorder %s23, 1
    %p83 = por %p81, %p82
    %p85 = scmp.ne.s32.totalorder %s70, %s84
    %p86 = scmp.eq.s32.totalorder %s23, 0
    %p87 = por %p85, %p86
    %s88 = ssub.s32 %s17, %s24
    %p89 = scmp.eq.s32.totalorder %s88, 0
    %s91 = sadd.s32 %s90, 1
    %s92 = scalar_select %p89, %s90, %s91
    %p95 = pneg %p89
    %p96 = scmp.eq.s32.totalorder %s17, 1
    %p97 = por %p95, %p96
    %p98 = scmp.ne.s32.totalorder %s90, %s93
    %p99 = scmp.eq.s32.totalorder %s17, 0
    %p100 = por %p98, %p99
    %p101 = scmp.ne.s32.totalorder %s90, %s93
    %p102 = scmp.eq.s32.totalorder %s22, 1
    %p103 = por %p101, %p102
    %p104 = scmp.ne.s32.totalorder %s93, %s94
    %p105 = scmp.eq.s32.totalorder %s22, 0
    %p106 = por %p104, %p105
    %p107 = scmp.ne.s32.totalorder %s93, %s94
    %p108 = scmp.eq.s32.totalorder %s23, 1
    %p109 = por %p107, %p108
    %p111 = scmp.ne.s32.totalorder %s94, %s110
    %p112 = scmp.eq.s32.totalorder %s23, 0
    %p113 = por %p111, %p112
    %s114 = ssub.s32 %s17, %s24
    %p115 = scmp.eq.s32.totalorder %s114, 0
    %s117 = sadd.s32 %s116, 1
    %s118 = scalar_select %p115, %s116, %s117
    %p121 = pneg %p115
    %p122 = scmp.eq.s32.totalorder %s17, 1
    %p123 = por %p121, %p122
    %p124 = scmp.ne.s32.totalorder %s116, %s119
    %p125 = scmp.eq.s32.totalorder %s17, 0
    %p126 = por %p124, %p125
    %p127 = scmp.ne.s32.totalorder %s116, %s119
    %p128 = scmp.eq.s32.totalorder %s22, 1
    %p129 = por %p127, %p128
    %p130 = scmp.ne.s32.totalorder %s119, %s120
    %p131 = scmp.eq.s32.totalorder %s22, 0
    %p132 = por %p130, %p131
    %p133 = scmp.ne.s32.totalorder %s119, %s120
    %p134 = scmp.eq.s32.totalorder %s23, 1
    %p135 = por %p133, %p134
    %p137 = scmp.ne.s32.totalorder %s120, %s136
    %p138 = scmp.eq.s32.totalorder %s23, 0
    %p139 = por %p137, %p138
    %s140 = ssub.s32 %s17, %s24
    %p141 = scmp.eq.s32.totalorder %s140, 0
    %s143 = sadd.s32 %s142, 1
    %s144 = scalar_select %p141, %s142, %s143
    %p147 = pneg %p141
    %p148 = scmp.eq.s32.totalorder %s17, 1
    %p149 = por %p147, %p148
    %p150 = scmp.ne.s32.totalorder %s142, %s145
    %p151 = scmp.eq.s32.totalorder %s17, 0
    %p152 = por %p150, %p151
    %p153 = scmp.ne.s32.totalorder %s142, %s145
    %p154 = scmp.eq.s32.totalorder %s22, 1
    %p155 = por %p153, %p154
    %p156 = scmp.ne.s32.totalorder %s145, %s146
    %p157 = scmp.eq.s32.totalorder %s22, 0
    %p158 = por %p156, %p157
    %p159 = scmp.ne.s32.totalorder %s145, %s146
    %p160 = scmp.eq.s32.totalorder %s23, 1
    %p161 = por %p159, %p160
    %p163 = scmp.ne.s32.totalorder %s146, %s162
    %p164 = scmp.eq.s32.totalorder %s23, 0
    %p165 = por %p163, %p164
    %s166 = ssub.s32 %s17, %s24
    %p167 = scmp.eq.s32.totalorder %s166, 0
    %s169 = sadd.s32 %s168, 1
    %s170 = scalar_select %p167, %s168, %s169
    %p173 = pneg %p167
    %p174 = scmp.eq.s32.totalorder %s17, 1
    %p175 = por %p173, %p174
    %p176 = scmp.ne.s32.totalorder %s168, %s171
    %p177 = scmp.eq.s32.totalorder %s17, 0
    %p178 = por %p176, %p177
    %p179 = scmp.ne.s32.totalorder %s168, %s171
    %p180 = scmp.eq.s32.totalorder %s22, 1
    %p181 = por %p179, %p180
    %p182 = scmp.ne.s32.totalorder %s171, %s172
    %p183 = scmp.eq.s32.totalorder %s22, 0
    %p184 = por %p182, %p183
    %p185 = scmp.ne.s32.totalorder %s171, %s172
    %p186 = scmp.eq.s32.totalorder %s23, 1
    %p187 = por %p185, %p186
    %p189 = scmp.ne.s32.totalorder %s172, %s188
    %p190 = scmp.eq.s32.totalorder %s23, 0
    %p191 = por %p189, %p190
    %s192 = ssub.s32 %s17, %s24
    %p193 = scmp.eq.s32.totalorder %s192, 0
    %s195 = sadd.s32 %s194, 1
    %s196 = scalar_select %p193, %s194, %s195
    %p199 = pneg %p193
    %p200 = scmp.eq.s32.totalorder %s17, 1
    %p201 = por %p199, %p200
    %p202 = scmp.ne.s32.totalorder %s194, %s197
    %p203 = scmp.eq.s32.totalorder %s17, 0
    %p204 = por %p202, %p203
    %p205 = scmp.ne.s32.totalorder %s194, %s197
    %p206 = scmp.eq.s32.totalorder %s22, 1
    %p207 = por %p205, %p206
    %p208 = scmp.ne.s32.totalorder %s197, %s198
    %p209 = scmp.eq.s32.totalorder %s22, 0
    %p210 = por %p208, %p209
    %p211 = scmp.ne.s32.totalorder %s197, %s198
    %p212 = scmp.eq.s32.totalorder %s23, 1
    %p213 = por %p211, %p212
    %p215 = scmp.ne.s32.totalorder %s198, %s214
    %p216 = scmp.eq.s32.totalorder %s23, 0
    %p217 = por %p215, %p216
    %s218 = ssub.s32 %s17, %s24
    %p219 = scmp.eq.s32.totalorder %s218, 0
    %s221 = sadd.s32 %s220, 1
    %s222 = scalar_select %p219, %s220, %s221
    %p225 = pneg %p219
    %p226 = scmp.eq.s32.totalorder %s17, 1
    %p227 = por %p225, %p226
    %p228 = scmp.ne.s32.totalorder %s220, %s223
    %p229 = scmp.eq.s32.totalorder %s17, 0
    %p230 = por %p228, %p229
    %p231 = scmp.ne.s32.totalorder %s220, %s223
    %p232 = scmp.eq.s32.totalorder %s22, 1
    %p233 = por %p231, %p232
    %p234 = scmp.ne.s32.totalorder %s223, %s224
    %p235 = scmp.eq.s32.totalorder %s22, 0
    %p236 = por %p234, %p235
    %p237 = scmp.ne.s32.totalorder %s223, %s224
    %p238 = scmp.eq.s32.totalorder %s23, 1
    %p239 = por %p237, %p238
    %p241 = scmp.ne.s32.totalorder %s224, %s240
    %p242 = scmp.eq.s32.totalorder %s23, 0
    %p243 = por %p241, %p242
    %s244 = ssub.s32 %s17, %s24
    %p245 = scmp.eq.s32.totalorder %s244, 0
    %s247 = sadd.s32 %s246, 1
    %s248 = scalar_select %p245, %s246, %s247
    %p251 = pneg %p245
    %p252 = scmp.eq.s32.totalorder %s17, 1
    %p253 = por %p251, %p252
    %p254 = scmp.ne.s32.totalorder %s246, %s249
    %p255 = scmp.eq.s32.totalorder %s17, 0
    %p256 = por %p254, %p255
    %p257 = scmp.ne.s32.totalorder %s246, %s249
    %p258 = scmp.eq.s32.totalorder %s22, 1
    %p259 = por %p257, %p258
    %p260 = scmp.ne.s32.totalorder %s249, %s250
    %p261 = scmp.eq.s32.totalorder %s22, 0
    %p262 = por %p260, %p261
    %p263 = scmp.ne.s32.totalorder %s249, %s250
    %p264 = scmp.eq.s32.totalorder %s23, 1
    %p265 = por %p263, %p264
    %p267 = scmp.ne.s32.totalorder %s250, %s266
    %p268 = scmp.eq.s32.totalorder %s23, 0
    %p269 = por %p267, %p268
    %s270 = ssub.s32 %s17, %s24
    %p271 = scmp.eq.s32.totalorder %s270, 0
    %s273 = sadd.s32 %s272, 1
    %s274 = scalar_select %p271, %s272, %s273
    %p277 = pneg %p271
    %p278 = scmp.eq.s32.totalorder %s17, 1
    %p279 = por %p277, %p278
    %p280 = scmp.ne.s32.totalorder %s272, %s275
    %p281 = scmp.eq.s32.totalorder %s17, 0
    %p282 = por %p280, %p281
    %p283 = scmp.ne.s32.totalorder %s272, %s275
    %p284 = scmp.eq.s32.totalorder %s22, 1
    %p285 = por %p283, %p284
    %p286 = scmp.ne.s32.totalorder %s275, %s276
    %p287 = scmp.eq.s32.totalorder %s22, 0
    %p288 = por %p286, %p287
    %p289 = scmp.ne.s32.totalorder %s275, %s276
    %p290 = scmp.eq.s32.totalorder %s23, 1
    %p291 = por %p289, %p290
    %p293 = scmp.ne.s32.totalorder %s276, %s292
    %p294 = scmp.eq.s32.totalorder %s23, 0
    %p295 = por %p293, %p294
    %p296 = scmp.le.s32.totalorder 1, %s17
    %p297 = scmp.lt.s32.totalorder %s17, 3
    %p298 = pnand %p296, %p297
    %p299 = pneg %p298
    // Predicated region
    $region9: #{meta_step.1} parent=5 // pred_check
      _
    $region10: #{meta_step.1} parent=5 // pred_check_branch
      %301 = sbr.rel (%p298) target = $region12
    $region11: #{meta_step.1} parent=5 // pred_region
      %s302 = ssub.s32 %s17, 1
      // Predicated region
      $region13: #{meta_step.1} parent=11 // pred_check
        %p303 = pneg %p38
      $region14: #{meta_step.1} parent=11 // pred_check_branch
        %305 = sbr.rel (%p303) target = $region16
      $region15: #{meta_step.1} parent=11 // pred_region
        _
      $region16: #{meta_step.1} parent=11 // pred_fallthru
        _
      // Predicated region
      $region17: #{meta_step.1} parent=11 // pred_check
        %p306 = pneg %p59
      $region18: #{meta_step.1} parent=11 // pred_check_branch
        %308 = sbr.rel (%p306) target = $region20
      $region19: #{meta_step.1} parent=11 // pred_region
        _
      $region20: #{meta_step.1} parent=11 // pred_fallthru
        _
      // Predicated region
      $region21: #{meta_step.1} parent=11 // pred_check
        %p309 = pneg %p80
      $region22: #{meta_step.1} parent=11 // pred_check_branch
        %311 = sbr.rel (%p309) target = $region24
      $region23: #{meta_step.1} parent=11 // pred_region
        _
      $region24: #{meta_step.1} parent=11 // pred_fallthru
        _
    $region12: #{meta_step.1} parent=5 // pred_fallthru
      _
    %p312 = scmp.lt.s32.totalorder %s17, 2
    // Predicated region
    $region25: #{meta_step.1} parent=5 // pred_check
      %p313 = pneg %p312
    $region26: #{meta_step.1} parent=5 // pred_check_branch
      %315 = sbr.rel (%p313) target = $region28
    $region27: #{meta_step.1} parent=5 // pred_region
      // Predicated region
      $region29: #{meta_step.1} parent=27 // pred_check
        %p316 = pneg %p100
      $region30: #{meta_step.1} parent=27 // pred_check_branch
        %318 = sbr.rel (%p316) target = $region32
      $region31: #{meta_step.1} parent=27 // pred_region
        %p319 = scmp.lt.s32.totalorder %s17, 1
        %s320 = scalar_select %p319, %s17, 1
        %s321 = smul.addr %s320, 8
        %s322 = scalar_lea.vmem %s3, %s321
      $region32: #{meta_step.1} parent=27 // pred_fallthru
        _
      // Predicated region
      $region33: #{meta_step.1} parent=27 // pred_check
        %p323 = pneg %p126
      $region34: #{meta_step.1} parent=27 // pred_check_branch
        %325 = sbr.rel (%p323) target = $region36
      $region35: #{meta_step.1} parent=27 // pred_region
        %p326 = scmp.lt.s32.totalorder %s17, 1
        %s327 = scalar_select %p326, %s17, 1
        %s328 = smul.addr %s327, 8
        %s329 = scalar_lea.vmem %s4, %s328
      $region36: #{meta_step.1} parent=27 // pred_fallthru
        _
      // Predicated region
      $region37: #{meta_step.1} parent=27 // pred_check
        %p330 = pneg %p152
      $region38: #{meta_step.1} parent=27 // pred_check_branch
        %332 = sbr.rel (%p330) target = $region40
      $region39: #{meta_step.1} parent=27 // pred_region
        %p333 = scmp.lt.s32.totalorder %s17, 1
        %s334 = scalar_select %p333, %s17, 1
        %s335 = smul.addr %s334, 2
        %s336 = smul.addr %s335, 8
        %s337 = scalar_lea.vmem %s5, %s336
      $region40: #{meta_step.1} parent=27 // pred_fallthru
        _
      // Predicated region
      $region41: #{meta_step.1} parent=27 // pred_check
        %p338 = pneg %p178
      $region42: #{meta_step.1} parent=27 // pred_check_branch
        %340 = sbr.rel (%p338) target = $region44
      $region43: #{meta_step.1} parent=27 // pred_region
        %p341 = scmp.lt.s32.totalorder %s17, 1
        %s342 = scalar_select %p341, %s17, 1
        %s343 = smul.addr %s342, 2
        %s344 = smul.addr %s343, 8
        %s345 = scalar_lea.vmem %s6, %s344
      $region44: #{meta_step.1} parent=27 // pred_fallthru
        _
    $region28: #{meta_step.1} parent=5 // pred_fallthru
      _
    %p346 = scmp.le.s32.totalorder 1, %s17
    %p347 = scmp.lt.s32.totalorder %s17, 3
    %p348 = pnand %p346, %p347
    %p349 = pneg %p348
    // Predicated region
    $region45: #{meta_step.1} parent=5 // pred_check
      _
    $region46: #{meta_step.1} parent=5 // pred_check_branch
      %351 = sbr.rel (%p348) target = $region48
    $region47: #{meta_step.1} parent=5 // pred_region
      %s352 = ssub.s32 %s17, 1
      %p353 = pneg %p38
      %p354 = pneg %p35
      %p355 = pneg %p59
      %p356 = pneg %p56
      %p357 = pneg %p80
      %p358 = pneg %p77
      %p359 = scmp.lt.s32.totalorder %s22, 1
      %s360 = scalar_select %p359, %s22, 1
      %s361 = smul.addr %s360, 8
      %s362 = scalar_lea.vmem %s3, %s361
      %p363 = pneg %p106
      %p364 = pneg %p103
      %p365 = scmp.lt.s32.totalorder %s22, 1
      %s366 = scalar_select %p365, %s22, 1
      %s367 = smul.addr %s366, 8
      %s368 = scalar_lea.vmem %s4, %s367
      %p369 = pneg %p132
      %p370 = pneg %p129
      %p371 = scmp.lt.s32.totalorder %s22, 1
      %s372 = scalar_select %p371, %s22, 1
      %s373 = smul.addr %s372, 2
      %s374 = smul.addr %s373, 8
      %s375 = scalar_lea.vmem %s5, %s374
      %p376 = pneg %p158
      %p377 = pneg %p155
      %p378 = scmp.lt.s32.totalorder %s22, 1
      %s379 = scalar_select %p378, %s22, 1
      %s380 = smul.addr %s379, 2
      %s381 = smul.addr %s380, 8
      %s382 = scalar_lea.vmem %s6, %s381
      %p383 = pneg %p184
      %p384 = pneg %p181
      %p385 = pneg %p210
      %p386 = pneg %p207
      %p387 = scmp.lt.s32.totalorder %s22, 1
      %s388 = scalar_select %p387, %s22, 1
      %s389 = scalar_lea.vmem %s7, %s388
      %p390 = pneg %p236
      %p391 = pneg %p233
      %p392 = scmp.lt.s32.totalorder %s22, 1
      %s393 = scalar_select %p392, %s22, 1
      %s394 = smul.addr %s393, 3
      %s395 = smul.addr %s394, 4
      %s396 = scalar_lea.vmem %s8, %s395
      %p397 = pneg %p262
      %p398 = pneg %p259
      %p399 = scmp.lt.s32.totalorder %s22, 1
      %s400 = scalar_select %p399, %s22, 1
      %s401 = scalar_lea.vmem %s9, %s400
      %p402 = pneg %p288
      %p403 = pneg %p285
      %p404 = scmp.lt.s32.totalorder %s22, 1
      %s405 = scalar_select %p404, %s22, 1
      %s406 = scalar_lea.vmem %s10, %s405
      %p407 = scmp.lt.s32.totalorder %s22, 1
      %s408 = scalar_select %p407, %s22, 1
      %s409 = smul.addr %s408, 8
      %s410 = scalar_lea.vmem %s3, %s409
      %p411 = scmp.lt.s32.totalorder %s22, 1
      %s412 = scalar_select %p411, %s22, 1
      %s413 = smul.addr %s412, 8
      %s414 = scalar_lea.vmem %s4, %s413
      %p415 = scmp.lt.s32.totalorder %s22, 1
      %s416 = scalar_select %p415, %s22, 1
      %s417 = smul.addr %s416, 2
      %s418 = smul.addr %s417, 8
      %s419 = scalar_lea.vmem %s5, %s418
      %p420 = scmp.lt.s32.totalorder %s22, 1
      %s421 = scalar_select %p420, %s22, 1
      %s422 = smul.addr %s421, 2
      %s423 = smul.addr %s422, 8
      %s424 = scalar_lea.vmem %s6, %s423
      %p425 = scmp.lt.s32.totalorder %s22, 1
      %s426 = scalar_select %p425, %s22, 1
      %s427 = scalar_lea.vmem %s7, %s426
      %p428 = scmp.lt.s32.totalorder %s22, 1
      %s429 = scalar_select %p428, %s22, 1
      %s430 = smul.addr %s429, 3
      %s431 = smul.addr %s430, 4
      %s432 = scalar_lea.vmem %s8, %s431
      %p433 = scmp.lt.s32.totalorder %s22, 1
      %s434 = scalar_select %p433, %s22, 1
      %s435 = scalar_lea.vmem %s9, %s434
      %p436 = scmp.lt.s32.totalorder %s22, 1
      %s437 = scalar_select %p436, %s22, 1
      %s438 = scalar_lea.vmem %s10, %s437
      %v439 = vld [vmem:[%s410] sm:$0xff]
      %v440 = vld [vmem:[%s419] sm:$0xff]
      %v441 = vld [vmem:[%s419 + $0x8] sm:$0xf]
      %v442 = vld [vmem:[%s414] sm:$0xff]
      %v443 = vld [vmem:[%s424] sm:$0xff]
      %v444 = vld [vmem:[%s424 + $0x8] sm:$0xf]
      %v445 = vlaneseq
      %v446 = vand.u32 %v445, 127
      %v447 = vld [vmem:[%s0] sm:$0x1]
      %v448 = vld [vmem:[%s1] sm:$0xf]
      %s449 = scalar_lea.vmem %s1, 4
      %v450 = vld [vmem:[%s449] sm:$0xf]
      %s451 = scalar_lea.vmem %s1, 8
      %v452 = vld [vmem:[%s451] sm:$0xf]
      %v453 = vld [vmem:[%s2] sm:$0x1]
      %vm454 = vcmask 16384
      %v455 = vsel %vm454, %v447, -inf
      %456 = vmax.xlane.f32.xlu0 %v455
      %v457 = vpop.xlane.xlu0 %456
      %v458 = vsub.f32 %v447, %v457
      %v459 = vmul.f32 %v458, 1.442695
      %v460 = vpow.pop %v459
      %v461 = vsel %vm454, %v460, 0.0
      %462 = vadd.xlane.f32.xlu0 %v461
      %v463 = vpop.xlane.xlu0 %462
      %v464 = vrcp.pop %v463
      %v465 = vmul.f32 %v463, %v464
      %v466 = vsub.f32 1.0, %v465
      %v467 = vmul.f32 %v464, %v466
      %v468 = vadd.f32 %v464, %v467
      %vm469 = vweird.f32 %v463
      %vm470 = vweird.f32 %v464
      %vm471 = vmor %vm469, %vm470
      %v472 = vsel %vm471, %v464, %v468
      %v473 = vand.u32 2147483647, %v463
      %vm474 = vcmp.eq.f32.partialorder %v473, 8.507059e+37
      %v475 = vand.u32 %v463, 2147483648
      %v476 = vor.u32 1.1754944e-38, %v475
      %v477 = vsel %vm474, %v476, %v472
      %v478 = vmul.f32 %v460, %v477
      %v480 = vperm.slane %v478, 0
      %481 = vset.pattern.permute.xlu0 0
      %482 = vperm.xlu0 %481, %v480
      %v483 = vpop.permute.xlu0 %482
      %v485 = vmul.f32 %v483, %v448
      %486 = vset.pattern.permute.xlu0 1
      %487 = vperm.xlu0 %486, %v480
      %v488 = vpop.permute.xlu0 %487
      %v490 = vmul.f32 %v488, %v450
      %v491 = vadd.f32 %v485, %v490
      %492 = vset.pattern.permute.xlu0 2
      %493 = vperm.xlu0 %492, %v480
      %v494 = vpop.permute.xlu0 %493
      %v496 = vmul.f32 %v494, %v452
      %v497 = vadd.f32 %v491, %v496
      %v499 = vperm.slane %v453, 0
      %vm501 = vcmask 31744
      %v503 = vsel %vm501, %v440, 0
      %v506 = vsel %vm501, %v441, 0
      %vm508 = vcmask 1043456
      %v510 = vsel %vm508, %v497, 0
      %512 = vmatpush.msra.mxu0 0.0
      %513 = vmatpush.msra.mxu0 0.0
      %514 = vmatpush.msra.mxu0 0.0
      %515 = vmatpush.msra.mxu0 0.0
      %516 = vmatpush.msra.mxu0 0.0
      %517 = vmatpush.msra.mxu0 0.0
      %518 = vmatpush.msra.mxu0 0.0
      %519 = vmatpush.msra.mxu0 0.0
      %520 = vmatpush.msra.mxu0 0.0
      %521 = vmatpush.msra.mxu0 0.0
      %522 = vmatpush.msra.mxu0 0.0
      %523 = vmatpush.msra.mxu0 0.0
      %524 = vmatpush.msra.mxu0 0.0
      %525 = vmatpush.msra.mxu0 0.0
      %526 = vmatpush.msra.mxu0 0.0
      %527 = vmatpush.msra.mxu0 %v510
      %528 = vmatmul.f32.gmra.mxu0 %v503
      %v529 = vpop.f32.mrf.mxu0
      %v530 = vadd.f32 %v499, %v529
      %531 = vmatmul.f32.gmra.mxu0 %v506
      %v532 = vpop.f32.mrf.mxu0
      %v533 = vadd.f32 %v499, %v532
      %534 = vdwg.mxu0
      %vm535 = vcmp.eq.s32.totalorder %v446, 0
      %v536 = vsel %vm501, %v530, -inf
      %537 = vmax.xlane.f32.xlu0 %v536
      %v538 = vpop.xlane.xlu0 %537
      %vm539 = vcmask 27648
      %v540 = vsel %vm539, %v533, -inf
      %541 = vmax.xlane.f32.xlu0 %v540
      %v542 = vpop.xlane.xlu0 %541
      %vm543 = vcmp.eq.f32.partialorder %v530, %v538
      %vm544 = vcmp.eq.f32.partialorder %v533, %v542
      %v545 = vsel %vm543, %v446, 4
      %v546 = vsel %vm544, %v446, 4
      %v547 = vsel %vm501, %v545, 2147483647
      %v548 = vand.u32 %v547, 65535
      %v549 = vshra.s32 %v547, 16
      %v550 = vcvt.s32.f32 %v548
      %v551 = vcvt.s32.f32 %v549
      %552 = vmin.xlane.f32.xlu0 %v551
      %v553 = vpop.xlane.xlu0 %552
      %vm554 = vcmp.eq.f32.partialorder %v551, %v553
      %v555 = vsel %vm554, %v550, inf
      %556 = vmin.xlane.f32.xlu0 %v555
      %v557 = vpop.xlane.xlu0 %556
      %v558 = vcvt.f32.s32 %v557
      %v559 = vcvt.f32.s32 %v553
      %v560 = vshll.u32 %v559, 16
      %v561 = vadd.s32 %v560, %v558
      %v562 = vsel %vm539, %v546, 2147483647
      %v563 = vand.u32 %v562, 65535
      %v564 = vshra.s32 %v562, 16
      %v565 = vcvt.s32.f32 %v563
      %v566 = vcvt.s32.f32 %v564
      %567 = vmin.xlane.f32.xlu0 %v566
      %v568 = vpop.xlane.xlu0 %567
      %vm569 = vcmp.eq.f32.partialorder %v566, %v568
      %v570 = vsel %vm569, %v565, inf
      %571 = vmin.xlane.f32.xlu0 %v570
      %v572 = vpop.xlane.xlu0 %571
      %v573 = vcvt.f32.s32 %v572
      %v574 = vcvt.f32.s32 %v568
      %v575 = vshll.u32 %v574, 16
      %v576 = vadd.s32 %v575, %v573
      %vm577 = vcmp.eq.s32.totalorder %v446, %v561
      %vm578 = vcmp.eq.s32.totalorder %v446, %v576
      %v579 = vsel %vm577, %v443, 0.0
      %v580 = vsel %vm578, %v444, 0.0
      %v581 = vsel %vm501, %v579, 0.0
      %v582 = vsel %vm539, %v580, 0.0
      %v583 = vadd.f32 %v581, %v582
      %584 = vadd.xlane.f32.xlu0 %v583
      %v585 = vpop.xlane.xlu0 %584
      %v586 = vrot.slane %v585, 4
      %v587 = vadd.f32 %v585, %v586
      %v588 = vrot.slane %v587, 2
      %v589 = vadd.f32 %v587, %v588
      %v590 = vrot.slane %v589, 1
      %v591 = vadd.f32 %v589, %v590
      %s592 = vtos %v591
      %v593 = vstv %s592
      %v594 = vsel %vm535, %v593, 0.0
      %v596 = vsel %vm501, %v439, 0
      %598 = vmatpush.msra.mxu0 0.0
      %599 = vmatpush.msra.mxu0 0.0
      %600 = vmatpush.msra.mxu0 0.0
      %601 = vmatpush.msra.mxu0 0.0
      %602 = vmatpush.msra.mxu0 0.0
      %603 = vmatpush.msra.mxu0 0.0
      %604 = vmatpush.msra.mxu0 0.0
      %605 = vmatpush.msra.mxu0 0.0
      %606 = vmatpush.msra.mxu0 0.0
      %607 = vmatpush.msra.mxu0 0.0
      %608 = vmatpush.msra.mxu0 0.0
      %609 = vmatpush.msra.mxu0 0.0
      %610 = vmatpush.msra.mxu0 0.0
      %611 = vmatpush.msra.mxu0 0.0
      %612 = vmatpush.msra.mxu0 0.0
      %613 = vmatpush.msra.mxu0 %v510
      %614 = vmatmul.f32.gmra.mxu0 %v596
      %v615 = vpop.f32.mrf.mxu0
      %v616 = vadd.f32 %v499, %v615
      %617 = vdwg.mxu0
      %v618 = vsel %vm501, %v616, -inf
      %619 = vmax.xlane.f32.xlu0 %v618
      %v620 = vpop.xlane.xlu0 %619
      %v621 = vsub.f32 %v616, %v620
      %v622 = vmul.f32 %v621, 1.442695
      %v623 = vpow.pop %v622
      %v624 = vsel %vm501, %v623, 0.0
      %625 = vadd.xlane.f32.xlu0 %v624
      %v626 = vpop.xlane.xlu0 %625
      %v627 = vrcp.pop %v626
      %v628 = vmul.f32 %v626, %v627
      %v629 = vsub.f32 1.0, %v628
      %v630 = vmul.f32 %v627, %v629
      %v631 = vadd.f32 %v627, %v630
      %vm632 = vweird.f32 %v626
      %vm633 = vweird.f32 %v627
      %vm634 = vmor %vm632, %vm633
      %v635 = vsel %vm634, %v627, %v631
      %v636 = vand.u32 2147483647, %v626
      %vm637 = vcmp.eq.f32.partialorder %v636, 8.507059e+37
      %v638 = vand.u32 %v626, 2147483648
      %v639 = vor.u32 1.1754944e-38, %v638
      %v640 = vsel %vm637, %v639, %v635
      %v641 = vmul.f32 %v623, %v640
      %v642 = vsub.f32 %v641, %v442
      %v643 = vmul.f32 %v642, 0.125
      %644 = vxpose.xlu0.b32.start [1/16] %v439, 128
      %645 = vxpose.xlu0.b32.cont [2/16] 0.0, 128
      %646 = vxpose.xlu0.b32.cont [3/16] 0.0, 128
      %647 = vxpose.xlu0.b32.cont [4/16] 0.0, 128
      %648 = vxpose.xlu0.b32.cont [5/16] 0.0, 128
      %649 = vxpose.xlu0.b32.cont [6/16] 0.0, 128
      %650 = vxpose.xlu0.b32.cont [7/16] 0.0, 128
      %651 = vxpose.xlu0.b32.cont [8/16] 0.0, 128
      %652 = vxpose.xlu0.b32.cont [9/16] 0.0, 128
      %653 = vxpose.xlu0.b32.cont [10/16] 0.0, 128
      %654 = vxpose.xlu0.b32.cont [11/16] 0.0, 128
      %655 = vxpose.xlu0.b32.cont [12/16] 0.0, 128
      %656 = vxpose.xlu0.b32.cont [13/16] 0.0, 128
      %657 = vxpose.xlu0.b32.cont [14/16] 0.0, 128
      %658 = vxpose.xlu0.b32.cont [15/16] 0.0, 128
      %659 = vxpose.xlu0.b32.end [16/16] 0.0, 128
      %v660 = vpop.trf.xlu0
      %v661 = vpop.trf.xlu0
      %v662 = vpop.trf.xlu0
      %v663 = vpop.trf.xlu0
      %v664 = vpop.trf.xlu0
      %v665 = vpop.trf.xlu0
      %v666 = vpop.trf.xlu0
      %v667 = vpop.trf.xlu0
      %v668 = vpop.trf.xlu0
      %v669 = vpop.trf.xlu0
      %v670 = vpop.trf.xlu0
      %v671 = vpop.trf.xlu0
      %v672 = vpop.trf.xlu0
      %v673 = vpop.trf.xlu0
      %v674 = vpop.trf.xlu0
      %v675 = vpop.trf.xlu0
      %vm676 = vcmask 64512
      %v678 = vsel %vm676, %v660, 0
      %680 = vmatpush.msra.mxu0 0.0
      %681 = vmatpush.msra.mxu0 0.0
      %682 = vmatpush.msra.mxu0 0.0
      %683 = vmatpush.msra.mxu0 0.0
      %684 = vmatpush.msra.mxu0 0.0
      %685 = vmatpush.msra.mxu0 0.0
      %686 = vmatpush.msra.mxu0 0.0
      %687 = vmatpush.msra.mxu0 0.0
      %688 = vmatpush.msra.mxu0 0.0
      %689 = vmatpush.msra.mxu0 0.0
      %690 = vmatpush.msra.mxu0 0.0
      %691 = vmatpush.msra.mxu0 0.0
      %692 = vmatpush.msra.mxu0 0.0
      %693 = vmatpush.msra.mxu0 0.0
      %694 = vmatpush.msra.mxu0 0.0
      %695 = vmatpush.msra.mxu0 %v643
      %696 = vmatmul.f32.gmra.mxu0 %v678
      %v697 = vpop.f32.mrf.mxu0
      %v698 = vadd.f32 0.0, %v697
      %699 = vdwg.mxu0
      %v700 = vsel %vm501, %v643, 0.0
      %v701 = vrot.slane %v700, 4
      %v702 = vadd.f32 %v700, %v701
      %v703 = vrot.slane %v702, 2
      %v704 = vadd.f32 %v702, %v703
      %v705 = vrot.slane %v704, 1
      %v706 = vadd.f32 %v704, %v705
      %v707 = vmul.f32 %v483, %v698
      %v708 = vmul.f32 %v488, %v698
      %v709 = vmul.f32 %v494, %v698
      %v710 = vmul.f32 %v448, %v698
      %v711 = vsel %vm539, %v710, 0.0
      %712 = vadd.xlane.f32.xlu0 %v711
      %v713 = vpop.xlane.xlu0 %712
      %v714 = vsel %vm508, %v713, 0.0
      %v715 = vrot.slane %v714, 4
      %v716 = vadd.f32 %v714, %v715
      %v717 = vrot.slane %v716, 2
      %v718 = vadd.f32 %v716, %v717
      %v719 = vrot.slane %v718, 1
      %v720 = vadd.f32 %v718, %v719
      %v721 = vsel %vm535, %v720, 0.0
      %v722 = vadd.f32 %v721, 0.0
      %v723 = vmul.f32 %v450, %v698
      %v724 = vsel %vm539, %v723, 0.0
      %725 = vadd.xlane.f32.xlu0 %v724
      %v726 = vpop.xlane.xlu0 %725
      %v727 = vsel %vm508, %v726, 0.0
      %v728 = vrot.slane %v727, 4
      %v729 = vadd.f32 %v727, %v728
      %v730 = vrot.slane %v729, 2
      %v731 = vadd.f32 %v729, %v730
      %v732 = vrot.slane %v731, 1
      %v733 = vadd.f32 %v731, %v732
      %vm734 = vcmp.eq.s32.totalorder %v446, 1
      %v735 = vsel %vm734, %v733, 0.0
      %v736 = vadd.f32 %v722, %v735
      %v737 = vmul.f32 %v452, %v698
      %v738 = vsel %vm539, %v737, 0.0
      %739 = vadd.xlane.f32.xlu0 %v738
      %v740 = vpop.xlane.xlu0 %739
      %v741 = vsel %vm508, %v740, 0.0
      %v742 = vrot.slane %v741, 4
      %v743 = vadd.f32 %v741, %v742
      %v744 = vrot.slane %v743, 2
      %v745 = vadd.f32 %v743, %v744
      %v746 = vrot.slane %v745, 1
      %v747 = vadd.f32 %v745, %v746
      %vm748 = vcmp.eq.s32.totalorder %v446, 2
      %v749 = vsel %vm748, %v747, 0.0
      %v750 = vadd.f32 %v736, %v749
      %v751 = vmul.f32 %v478, %v750
      %v752 = vsel %vm454, %v751, 0.0
      %753 = vadd.xlane.f32.xlu0 %v752
      %v754 = vpop.xlane.xlu0 %753
      %v755 = vsub.f32 %v750, %v754
      %v756 = vmul.f32 %v478, %v755
      %v757 = vmul.f32 %v756, 0.01
      %v758 = vsub.f32 %v447, %v757
      %v759 = vmul.f32 %v707, 0.01
      %v760 = vsub.f32 %v448, %v759
      %v761 = vmul.f32 %v708, 0.01
      %v762 = vsub.f32 %v450, %v761
      %v763 = vmul.f32 %v709, 0.01
      %v764 = vsub.f32 %v452, %v763
      %v765 = vmul.f32 %v706, 0.01
      %v766 = vsub.f32 %v453, %v765
      %v767 = vsel %vm454, %v758, -inf
      %768 = vmax.xlane.f32.xlu0 %v767
      %v769 = vpop.xlane.xlu0 %768
      %v770 = vsub.f32 %v758, %v769
      %v771 = vmul.f32 %v770, 1.442695
      %v772 = vpow.pop %v771
      %v773 = vsel %vm454, %v772, 0.0
      %774 = vadd.xlane.f32.xlu0 %v773
      %v775 = vpop.xlane.xlu0 %774
      %v776 = vrcp.pop %v775
      %v777 = vmul.f32 %v775, %v776
      %v778 = vsub.f32 1.0, %v777
      %v779 = vmul.f32 %v776, %v778
      %v780 = vadd.f32 %v776, %v779
      %vm781 = vweird.f32 %v775
      %vm782 = vweird.f32 %v776
      %vm783 = vmor %vm781, %vm782
      %v784 = vsel %vm783, %v776, %v780
      %v785 = vand.u32 2147483647, %v775
      %vm786 = vcmp.eq.f32.partialorder %v785, 8.507059e+37
      %v787 = vand.u32 %v775, 2147483648
      %v788 = vor.u32 1.1754944e-38, %v787
      %v789 = vsel %vm786, %v788, %v784
      %v790 = vmul.f32 %v772, %v789
      %v792 = vperm.slane %v790, 0
      %793 = vset.pattern.permute.xlu0 0
      %794 = vperm.xlu0 %793, %v792
      %v795 = vpop.permute.xlu0 %794
      %v797 = vmul.f32 %v795, %v760
      %798 = vset.pattern.permute.xlu0 1
      %799 = vperm.xlu0 %798, %v792
      %v800 = vpop.permute.xlu0 %799
      %v802 = vmul.f32 %v800, %v762
      %v803 = vadd.f32 %v797, %v802
      %804 = vset.pattern.permute.xlu0 2
      %805 = vperm.xlu0 %804, %v792
      %v806 = vpop.permute.xlu0 %805
      %v808 = vmul.f32 %v806, %v764
      %v809 = vadd.f32 %v803, %v808
      %v811 = vperm.slane %v766, 0
      %v814 = vsel %vm508, %v809, 0
      %816 = vmatpush.msra.mxu0 0.0
      %817 = vmatpush.msra.mxu0 0.0
      %818 = vmatpush.msra.mxu0 0.0
      %819 = vmatpush.msra.mxu0 0.0
      %820 = vmatpush.msra.mxu0 0.0
      %821 = vmatpush.msra.mxu0 0.0
      %822 = vmatpush.msra.mxu0 0.0
      %823 = vmatpush.msra.mxu0 0.0
      %824 = vmatpush.msra.mxu0 0.0
      %825 = vmatpush.msra.mxu0 0.0
      %826 = vmatpush.msra.mxu0 0.0
      %827 = vmatpush.msra.mxu0 0.0
      %828 = vmatpush.msra.mxu0 0.0
      %829 = vmatpush.msra.mxu0 0.0
      %830 = vmatpush.msra.mxu0 0.0
      %831 = vmatpush.msra.mxu0 %v814
      %832 = vmatmul.f32.gmra.mxu0 %v503
      %v833 = vpop.f32.mrf.mxu0
      %v834 = vadd.f32 %v811, %v833
      %835 = vmatmul.f32.gmra.mxu0 %v506
      %v836 = vpop.f32.mrf.mxu0
      %v837 = vadd.f32 %v811, %v836
      %838 = vdwg.mxu0
      %v839 = vsel %vm501, %v834, -inf
      %840 = vmax.xlane.f32.xlu0 %v839
      %v841 = vpop.xlane.xlu0 %840
      %v842 = vsel %vm539, %v837, -inf
      %843 = vmax.xlane.f32.xlu0 %v842
      %v844 = vpop.xlane.xlu0 %843
      %vm845 = vcmp.eq.f32.partialorder %v834, %v841
      %vm846 = vcmp.eq.f32.partialorder %v837, %v844
      %v847 = vsel %vm845, %v446, 4
      %v848 = vsel %vm846, %v446, 4
      %v849 = vsel %vm501, %v847, 2147483647
      %v850 = vand.u32 %v849, 65535
      %v851 = vshra.s32 %v849, 16
      %v852 = vcvt.s32.f32 %v850
      %v853 = vcvt.s32.f32 %v851
      %854 = vmin.xlane.f32.xlu0 %v853
      %v855 = vpop.xlane.xlu0 %854
      %vm856 = vcmp.eq.f32.partialorder %v853, %v855
      %v857 = vsel %vm856, %v852, inf
      %858 = vmin.xlane.f32.xlu0 %v857
      %v859 = vpop.xlane.xlu0 %858
      %v860 = vcvt.f32.s32 %v859
      %v861 = vcvt.f32.s32 %v855
      %v862 = vshll.u32 %v861, 16
      %v863 = vadd.s32 %v862, %v860
      %v864 = vsel %vm539, %v848, 2147483647
      %v865 = vand.u32 %v864, 65535
      %v866 = vshra.s32 %v864, 16
      %v867 = vcvt.s32.f32 %v865
      %v868 = vcvt.s32.f32 %v866
      %869 = vmin.xlane.f32.xlu0 %v868
      %v870 = vpop.xlane.xlu0 %869
      %vm871 = vcmp.eq.f32.partialorder %v868, %v870
      %v872 = vsel %vm871, %v867, inf
      %873 = vmin.xlane.f32.xlu0 %v872
      %v874 = vpop.xlane.xlu0 %873
      %v875 = vcvt.f32.s32 %v874
      %v876 = vcvt.f32.s32 %v870
      %v877 = vshll.u32 %v876, 16
      %v878 = vadd.s32 %v877, %v875
      %vm879 = vcmp.eq.s32.totalorder %v446, %v863
      %vm880 = vcmp.eq.s32.totalorder %v446, %v878
      %v881 = vsel %vm879, %v443, 0.0
      %v882 = vsel %vm880, %v444, 0.0
      %v883 = vsel %vm501, %v881, 0.0
      %v884 = vsel %vm539, %v882, 0.0
      %v885 = vadd.f32 %v883, %v884
      %886 = vadd.xlane.f32.xlu0 %v885
      %v887 = vpop.xlane.xlu0 %886
      %v888 = vrot.slane %v887, 4
      %v889 = vadd.f32 %v887, %v888
      %v890 = vrot.slane %v889, 2
      %v891 = vadd.f32 %v889, %v890
      %v892 = vrot.slane %v891, 1
      %v893 = vadd.f32 %v891, %v892
      %s894 = vtos %v893
      %v895 = vstv %s894
      %v896 = vsel %vm734, %v895, 0.0
      %v897 = vadd.f32 %v594, %v896
      %898 = vmatpush.msra.mxu0 0.0
      %899 = vmatpush.msra.mxu0 0.0
      %900 = vmatpush.msra.mxu0 0.0
      %901 = vmatpush.msra.mxu0 0.0
      %902 = vmatpush.msra.mxu0 0.0
      %903 = vmatpush.msra.mxu0 0.0
      %904 = vmatpush.msra.mxu0 0.0
      %905 = vmatpush.msra.mxu0 0.0
      %906 = vmatpush.msra.mxu0 0.0
      %907 = vmatpush.msra.mxu0 0.0
      %908 = vmatpush.msra.mxu0 0.0
      %909 = vmatpush.msra.mxu0 0.0
      %910 = vmatpush.msra.mxu0 0.0
      %911 = vmatpush.msra.mxu0 0.0
      %912 = vmatpush.msra.mxu0 0.0
      %913 = vmatpush.msra.mxu0 %v814
      %914 = vmatmul.f32.gmra.mxu0 %v596
      %v915 = vpop.f32.mrf.mxu0
      %v916 = vadd.f32 %v811, %v915
      %917 = vdwg.mxu0
      %v918 = vsel %vm501, %v916, -inf
      %919 = vmax.xlane.f32.xlu0 %v918
      %v920 = vpop.xlane.xlu0 %919
      %v921 = vsub.f32 %v916, %v920
      %v922 = vmul.f32 %v921, 1.442695
      %v923 = vpow.pop %v922
      %v924 = vsel %vm501, %v923, 0.0
      %925 = vadd.xlane.f32.xlu0 %v924
      %v926 = vpop.xlane.xlu0 %925
      %v927 = vrcp.pop %v926
      %v928 = vmul.f32 %v926, %v927
      %v929 = vsub.f32 1.0, %v928
      %v930 = vmul.f32 %v927, %v929
      %v931 = vadd.f32 %v927, %v930
      %vm932 = vweird.f32 %v926
      %vm933 = vweird.f32 %v927
      %vm934 = vmor %vm932, %vm933
      %v935 = vsel %vm934, %v927, %v931
      %v936 = vand.u32 2147483647, %v926
      %vm937 = vcmp.eq.f32.partialorder %v936, 8.507059e+37
      %v938 = vand.u32 %v926, 2147483648
      %v939 = vor.u32 1.1754944e-38, %v938
      %v940 = vsel %vm937, %v939, %v935
      %v941 = vmul.f32 %v923, %v940
      %v942 = vsub.f32 %v941, %v442
      %v943 = vmul.f32 %v942, 0.125
      %944 = vmatpush.msra.mxu0 0.0
      %945 = vmatpush.msra.mxu0 0.0
      %946 = vmatpush.msra.mxu0 0.0
      %947 = vmatpush.msra.mxu0 0.0
      %948 = vmatpush.msra.mxu0 0.0
      %949 = vmatpush.msra.mxu0 0.0
      %950 = vmatpush.msra.mxu0 0.0
      %951 = vmatpush.msra.mxu0 0.0
      %952 = vmatpush.msra.mxu0 0.0
      %953 = vmatpush.msra.mxu0 0.0
      %954 = vmatpush.msra.mxu0 0.0
      %955 = vmatpush.msra.mxu0 0.0
      %956 = vmatpush.msra.mxu0 0.0
      %957 = vmatpush.msra.mxu0 0.0
      %958 = vmatpush.msra.mxu0 0.0
      %959 = vmatpush.msra.mxu0 %v943
      %960 = vmatmul.f32.gmra.mxu0 %v678
      %v961 = vpop.f32.mrf.mxu0
      %v962 = vadd.f32 0.0, %v961
      %963 = vdwg.mxu0
      %v964 = vsel %vm501, %v943, 0.0
      %v965 = vrot.slane %v964, 4
      %v966 = vadd.f32 %v964, %v965
      %v967 = vrot.slane %v966, 2
      %v968 = vadd.f32 %v966, %v967
      %v969 = vrot.slane %v968, 1
      %v970 = vadd.f32 %v968, %v969
      %v971 = vmul.f32 %v795, %v962
      %v972 = vmul.f32 %v800, %v962
      %v973 = vmul.f32 %v806, %v962
      %v974 = vmul.f32 %v760, %v962
      %v975 = vsel %vm539, %v974, 0.0
      %976 = vadd.xlane.f32.xlu0 %v975
      %v977 = vpop.xlane.xlu0 %976
      %v978 = vsel %vm508, %v977, 0.0
      %v979 = vrot.slane %v978, 4
      %v980 = vadd.f32 %v978, %v979
      %v981 = vrot.slane %v980, 2
      %v982 = vadd.f32 %v980, %v981
      %v983 = vrot.slane %v982, 1
      %v984 = vadd.f32 %v982, %v983
      %v985 = vsel %vm535, %v984, 0.0
      %v986 = vadd.f32 %v985, 0.0
      %v987 = vmul.f32 %v762, %v962
      %v988 = vsel %vm539, %v987, 0.0
      %989 = vadd.xlane.f32.xlu0 %v988
      %v990 = vpop.xlane.xlu0 %989
      %v991 = vsel %vm508, %v990, 0.0
      %v992 = vrot.slane %v991, 4
      %v993 = vadd.f32 %v991, %v992
      %v994 = vrot.slane %v993, 2
      %v995 = vadd.f32 %v993, %v994
      %v996 = vrot.slane %v995, 1
      %v997 = vadd.f32 %v995, %v996
      %v998 = vsel %vm734, %v997, 0.0
      %v999 = vadd.f32 %v986, %v998
      %v1000 = vmul.f32 %v764, %v962
      %v1001 = vsel %vm539, %v1000, 0.0
      %1002 = vadd.xlane.f32.xlu0 %v1001
      %v1003 = vpop.xlane.xlu0 %1002
      %v1004 = vsel %vm508, %v1003, 0.0
      %v1005 = vrot.slane %v1004, 4
      %v1006 = vadd.f32 %v1004, %v1005
      %v1007 = vrot.slane %v1006, 2
      %v1008 = vadd.f32 %v1006, %v1007
      %v1009 = vrot.slane %v1008, 1
      %v1010 = vadd.f32 %v1008, %v1009
      %v1011 = vsel %vm748, %v1010, 0.0
      %v1012 = vadd.f32 %v999, %v1011
      %v1013 = vmul.f32 %v790, %v1012
      %v1014 = vsel %vm454, %v1013, 0.0
      %1015 = vadd.xlane.f32.xlu0 %v1014
      %v1016 = vpop.xlane.xlu0 %1015
      %v1017 = vsub.f32 %v1012, %v1016
      %v1018 = vmul.f32 %v790, %v1017
      %v1019 = vmul.f32 %v1018, 0.01
      %v1020 = vsub.f32 %v758, %v1019
      %v1021 = vmul.f32 %v971, 0.01
      %v1022 = vsub.f32 %v760, %v1021
      %v1023 = vmul.f32 %v972, 0.01
      %v1024 = vsub.f32 %v762, %v1023
      %v1025 = vmul.f32 %v973, 0.01
      %v1026 = vsub.f32 %v764, %v1025
      %v1027 = vmul.f32 %v970, 0.01
      %v1028 = vsub.f32 %v766, %v1027
      %v1029 = vsel %vm454, %v1020, -inf
      %1030 = vmax.xlane.f32.xlu0 %v1029
      %v1031 = vpop.xlane.xlu0 %1030
      %v1032 = vsub.f32 %v1020, %v1031
      %v1033 = vmul.f32 %v1032, 1.442695
      %v1034 = vpow.pop %v1033
      %v1035 = vsel %vm454, %v1034, 0.0
      %1036 = vadd.xlane.f32.xlu0 %v1035
      %v1037 = vpop.xlane.xlu0 %1036
      %v1038 = vrcp.pop %v1037
      %v1039 = vmul.f32 %v1037, %v1038
      %v1040 = vsub.f32 1.0, %v1039
      %v1041 = vmul.f32 %v1038, %v1040
      %v1042 = vadd.f32 %v1038, %v1041
      %vm1043 = vweird.f32 %v1037
      %vm1044 = vweird.f32 %v1038
      %vm1045 = vmor %vm1043, %vm1044
      %v1046 = vsel %vm1045, %v1038, %v1042
      %v1047 = vand.u32 2147483647, %v1037
      %vm1048 = vcmp.eq.f32.partialorder %v1047, 8.507059e+37
      %v1049 = vand.u32 %v1037, 2147483648
      %v1050 = vor.u32 1.1754944e-38, %v1049
      %v1051 = vsel %vm1048, %v1050, %v1046
      %v1052 = vmul.f32 %v1034, %v1051
      %v1054 = vperm.slane %v1052, 0
      %1055 = vset.pattern.permute.xlu0 0
      %1056 = vperm.xlu0 %1055, %v1054
      %v1057 = vpop.permute.xlu0 %1056
      %v1059 = vmul.f32 %v1057, %v1022
      %1060 = vset.pattern.permute.xlu0 1
      %1061 = vperm.xlu0 %1060, %v1054
      %v1062 = vpop.permute.xlu0 %1061
      %v1064 = vmul.f32 %v1062, %v1024
      %v1065 = vadd.f32 %v1059, %v1064
      %1066 = vset.pattern.permute.xlu0 2
      %1067 = vperm.xlu0 %1066, %v1054
      %v1068 = vpop.permute.xlu0 %1067
      %v1070 = vmul.f32 %v1068, %v1026
      %v1071 = vadd.f32 %v1065, %v1070
      %v1073 = vperm.slane %v1028, 0
      %v1076 = vsel %vm508, %v1071, 0
      %1078 = vmatpush.msra.mxu0 0.0
      %1079 = vmatpush.msra.mxu0 0.0
      %1080 = vmatpush.msra.mxu0 0.0
      %1081 = vmatpush.msra.mxu0 0.0
      %1082 = vmatpush.msra.mxu0 0.0
      %1083 = vmatpush.msra.mxu0 0.0
      %1084 = vmatpush.msra.mxu0 0.0
      %1085 = vmatpush.msra.mxu0 0.0
      %1086 = vmatpush.msra.mxu0 0.0
      %1087 = vmatpush.msra.mxu0 0.0
      %1088 = vmatpush.msra.mxu0 0.0
      %1089 = vmatpush.msra.mxu0 0.0
      %1090 = vmatpush.msra.mxu0 0.0
      %1091 = vmatpush.msra.mxu0 0.0
      %1092 = vmatpush.msra.mxu0 0.0
      %1093 = vmatpush.msra.mxu0 %v1076
      %1094 = vmatmul.f32.gmra.mxu0 %v503
      %v1095 = vpop.f32.mrf.mxu0
      %v1096 = vadd.f32 %v1073, %v1095
      %1097 = vmatmul.f32.gmra.mxu0 %v506
      %v1098 = vpop.f32.mrf.mxu0
      %v1099 = vadd.f32 %v1073, %v1098
      %1100 = vdwg.mxu0
      %v1101 = vsel %vm501, %v1096, -inf
      %1102 = vmax.xlane.f32.xlu0 %v1101
      %v1103 = vpop.xlane.xlu0 %1102
      %v1104 = vsel %vm539, %v1099, -inf
      %1105 = vmax.xlane.f32.xlu0 %v1104
      %v1106 = vpop.xlane.xlu0 %1105
      %vm1107 = vcmp.eq.f32.partialorder %v1096, %v1103
      %vm1108 = vcmp.eq.f32.partialorder %v1099, %v1106
      %v1109 = vsel %vm1107, %v446, 4
      %v1110 = vsel %vm1108, %v446, 4
      %v1111 = vsel %vm501, %v1109, 2147483647
      %v1112 = vand.u32 %v1111, 65535
      %v1113 = vshra.s32 %v1111, 16
      %v1114 = vcvt.s32.f32 %v1112
      %v1115 = vcvt.s32.f32 %v1113
      %1116 = vmin.xlane.f32.xlu0 %v1115
      %v1117 = vpop.xlane.xlu0 %1116
      %vm1118 = vcmp.eq.f32.partialorder %v1115, %v1117
      %v1119 = vsel %vm1118, %v1114, inf
      %1120 = vmin.xlane.f32.xlu0 %v1119
      %v1121 = vpop.xlane.xlu0 %1120
      %v1122 = vcvt.f32.s32 %v1121
      %v1123 = vcvt.f32.s32 %v1117
      %v1124 = vshll.u32 %v1123, 16
      %v1125 = vadd.s32 %v1124, %v1122
      %v1126 = vsel %vm539, %v1110, 2147483647
      %v1127 = vand.u32 %v1126, 65535
      %v1128 = vshra.s32 %v1126, 16
      %v1129 = vcvt.s32.f32 %v1127
      %v1130 = vcvt.s32.f32 %v1128
      %1131 = vmin.xlane.f32.xlu0 %v1130
      %v1132 = vpop.xlane.xlu0 %1131
      %vm1133 = vcmp.eq.f32.partialorder %v1130, %v1132
      %v1134 = vsel %vm1133, %v1129, inf
      %1135 = vmin.xlane.f32.xlu0 %v1134
      %v1136 = vpop.xlane.xlu0 %1135
      %v1137 = vcvt.f32.s32 %v1136
      %v1138 = vcvt.f32.s32 %v1132
      %v1139 = vshll.u32 %v1138, 16
      %v1140 = vadd.s32 %v1139, %v1137
      %vm1141 = vcmp.eq.s32.totalorder %v446, %v1125
      %vm1142 = vcmp.eq.s32.totalorder %v446, %v1140
      %v1143 = vsel %vm1141, %v443, 0.0
      %v1144 = vsel %vm1142, %v444, 0.0
      %v1145 = vsel %vm501, %v1143, 0.0
      %v1146 = vsel %vm539, %v1144, 0.0
      %v1147 = vadd.f32 %v1145, %v1146
      %1148 = vadd.xlane.f32.xlu0 %v1147
      %v1149 = vpop.xlane.xlu0 %1148
      %v1150 = vrot.slane %v1149, 4
      %v1151 = vadd.f32 %v1149, %v1150
      %v1152 = vrot.slane %v1151, 2
      %v1153 = vadd.f32 %v1151, %v1152
      %v1154 = vrot.slane %v1153, 1
      %v1155 = vadd.f32 %v1153, %v1154
      %s1156 = vtos %v1155
      %v1157 = vstv %s1156
      %v1158 = vsel %vm748, %v1157, 0.0
      %v1159 = vadd.f32 %v897, %v1158
      %v1160 = vsub.f32 %v1096, %v1103
      %v1161 = vsub.f32 %v1099, %v1106
      %v1162 = vmul.f32 %v1160, 1.442695
      %v1163 = vpow.pop %v1162
      %v1164 = vmul.f32 %v1161, 1.442695
      %v1165 = vpow.pop %v1164
      %v1166 = vsel %vm501, %v1163, 0.0
      %1167 = vadd.xlane.f32.xlu0 %v1166
      %v1168 = vpop.xlane.xlu0 %1167
      %v1169 = vsel %vm539, %v1165, 0.0
      %1170 = vadd.xlane.f32.xlu0 %v1169
      %v1171 = vpop.xlane.xlu0 %1170
      %v1172 = vrcp.pop %v1168
      %v1173 = vmul.f32 %v1168, %v1172
      %v1174 = vsub.f32 1.0, %v1173
      %v1175 = vmul.f32 %v1172, %v1174
      %v1176 = vadd.f32 %v1172, %v1175
      %vm1177 = vweird.f32 %v1168
      %vm1178 = vweird.f32 %v1172
      %vm1179 = vmor %vm1177, %vm1178
      %v1180 = vsel %vm1179, %v1172, %v1176
      %v1181 = vand.u32 2147483647, %v1168
      %vm1182 = vcmp.eq.f32.partialorder %v1181, 8.507059e+37
      %v1183 = vand.u32 %v1168, 2147483648
      %v1184 = vor.u32 1.1754944e-38, %v1183
      %v1185 = vsel %vm1182, %v1184, %v1180
      %v1186 = vmul.f32 %v1163, %v1185
      %v1187 = vrcp.pop %v1171
      %v1188 = vmul.f32 %v1171, %v1187
      %v1189 = vsub.f32 1.0, %v1188
      %v1190 = vmul.f32 %v1187, %v1189
      %v1191 = vadd.f32 %v1187, %v1190
      %vm1192 = vweird.f32 %v1171
      %vm1193 = vweird.f32 %v1187
      %vm1194 = vmor %vm1192, %vm1193
      %v1195 = vsel %vm1194, %v1187, %v1191
      %v1196 = vand.u32 2147483647, %v1171
      %vm1197 = vcmp.eq.f32.partialorder %v1196, 8.507059e+37
      %v1198 = vand.u32 %v1171, 2147483648
      %v1199 = vor.u32 1.1754944e-38, %v1198
      %v1200 = vsel %vm1197, %v1199, %v1195
      %v1201 = vmul.f32 %v1165, %v1200
      %v1202 = vsub.f32 %v1186, %v443
      %v1203 = vsub.f32 %v1201, %v444
      %v1204 = vmul.f32 %v1202, 0.083333336
      %v1205 = vmul.f32 %v1203, 0.083333336
      %1206 = vxpose.xlu0.b32.start [1/16] %v440, 128
      %1207 = vxpose.xlu0.b32.cont [2/16] %v441, 128
      %1208 = vxpose.xlu0.b32.cont [3/16] 0.0, 128
      %1209 = vxpose.xlu0.b32.cont [4/16] 0.0, 128
      %1210 = vxpose.xlu0.b32.cont [5/16] 0.0, 128
      %1211 = vxpose.xlu0.b32.cont [6/16] 0.0, 128
      %1212 = vxpose.xlu0.b32.cont [7/16] 0.0, 128
      %1213 = vxpose.xlu0.b32.cont [8/16] 0.0, 128
      %1214 = vxpose.xlu0.b32.cont [9/16] 0.0, 128
      %1215 = vxpose.xlu0.b32.cont [10/16] 0.0, 128
      %1216 = vxpose.xlu0.b32.cont [11/16] 0.0, 128
      %1217 = vxpose.xlu0.b32.cont [12/16] 0.0, 128
      %1218 = vxpose.xlu0.b32.cont [13/16] 0.0, 128
      %1219 = vxpose.xlu0.b32.cont [14/16] 0.0, 128
      %1220 = vxpose.xlu0.b32.cont [15/16] 0.0, 128
      %1221 = vxpose.xlu0.b32.end [16/16] 0.0, 128
      %v1222 = vpop.trf.xlu0
      %v1223 = vpop.trf.xlu0
      %v1224 = vpop.trf.xlu0
      %v1225 = vpop.trf.xlu0
      %v1226 = vpop.trf.xlu0
      %v1227 = vpop.trf.xlu0
      %v1228 = vpop.trf.xlu0
      %v1229 = vpop.trf.xlu0
      %v1230 = vpop.trf.xlu0
      %v1231 = vpop.trf.xlu0
      %v1232 = vpop.trf.xlu0
      %v1233 = vpop.trf.xlu0
      %v1234 = vpop.trf.xlu0
      %v1235 = vpop.trf.xlu0
      %v1236 = vpop.trf.xlu0
      %v1237 = vpop.trf.xlu0
      %vm1238 = vcmask 97280
      %v1240 = vsel %vm1238, %v1222, 0
      %v1243 = vsel %vm508, %v1205, 0
      %1245 = vmatpush.msra.mxu0 0.0
      %1246 = vmatpush.msra.mxu0 0.0
      %1247 = vmatpush.msra.mxu0 0.0
      %1248 = vmatpush.msra.mxu0 0.0
      %1249 = vmatpush.msra.mxu0 0.0
      %1250 = vmatpush.msra.mxu0 0.0
      %1251 = vmatpush.msra.mxu0 0.0
      %1252 = vmatpush.msra.mxu0 0.0
      %1253 = vmatpush.msra.mxu0 0.0
      %1254 = vmatpush.msra.mxu0 0.0
      %1255 = vmatpush.msra.mxu0 0.0
      %1256 = vmatpush.msra.mxu0 0.0
      %1257 = vmatpush.msra.mxu0 0.0
      %1258 = vmatpush.msra.mxu0 0.0
      %1259 = vmatpush.msra.mxu0 %v1243
      %1260 = vmatpush.msra.mxu0 %v1204
      %1261 = vmatmul.f32.gmra.mxu0 %v1240
      %v1262 = vpop.f32.mrf.mxu0
      %v1263 = vadd.f32 0.0, %v1262
      %1264 = vdwg.mxu0
      %v1265 = vsel %vm501, %v1204, 0.0
      %v1266 = vsel %vm539, %v1205, 0.0
      %v1267 = vadd.f32 %v1265, %v1266
      %v1268 = vrot.slane %v1267, 4
      %v1269 = vadd.f32 %v1267, %v1268
      %v1270 = vrot.slane %v1269, 2
      %v1271 = vadd.f32 %v1269, %v1270
      %v1272 = vrot.slane %v1271, 1
      %v1273 = vadd.f32 %v1271, %v1272
      %v1274 = vmul.f32 %v1057, %v1263
      %v1275 = vmul.f32 %v1062, %v1263
      %v1276 = vmul.f32 %v1068, %v1263
      %v1277 = vmul.f32 %v1022, %v1263
      %v1278 = vsel %vm539, %v1277, 0.0
      %1279 = vadd.xlane.f32.xlu0 %v1278
      %v1280 = vpop.xlane.xlu0 %1279
      %v1281 = vsel %vm508, %v1280, 0.0
      %v1282 = vrot.slane %v1281, 4
      %v1283 = vadd.f32 %v1281, %v1282
      %v1284 = vrot.slane %v1283, 2
      %v1285 = vadd.f32 %v1283, %v1284
      %v1286 = vrot.slane %v1285, 1
      %v1287 = vadd.f32 %v1285, %v1286
      %v1288 = vsel %vm535, %v1287, 0.0
      %v1289 = vadd.f32 %v1288, 0.0
      %v1290 = vmul.f32 %v1024, %v1263
      %v1291 = vsel %vm539, %v1290, 0.0
      %1292 = vadd.xlane.f32.xlu0 %v1291
      %v1293 = vpop.xlane.xlu0 %1292
      %v1294 = vsel %vm508, %v1293, 0.0
      %v1295 = vrot.slane %v1294, 4
      %v1296 = vadd.f32 %v1294, %v1295
      %v1297 = vrot.slane %v1296, 2
      %v1298 = vadd.f32 %v1296, %v1297
      %v1299 = vrot.slane %v1298, 1
      %v1300 = vadd.f32 %v1298, %v1299
      %v1301 = vsel %vm734, %v1300, 0.0
      %v1302 = vadd.f32 %v1289, %v1301
      %v1303 = vmul.f32 %v1026, %v1263
      %v1304 = vsel %vm539, %v1303, 0.0
      %1305 = vadd.xlane.f32.xlu0 %v1304
      %v1306 = vpop.xlane.xlu0 %1305
      %v1307 = vsel %vm508, %v1306, 0.0
      %v1308 = vrot.slane %v1307, 4
      %v1309 = vadd.f32 %v1307, %v1308
      %v1310 = vrot.slane %v1309, 2
      %v1311 = vadd.f32 %v1309, %v1310
      %v1312 = vrot.slane %v1311, 1
      %v1313 = vadd.f32 %v1311, %v1312
      %v1314 = vsel %vm748, %v1313, 0.0
      %v1315 = vadd.f32 %v1302, %v1314
      %v1316 = vmul.f32 %v1052, %v1315
      %v1317 = vsel %vm454, %v1316, 0.0
      %1318 = vadd.xlane.f32.xlu0 %v1317
      %v1319 = vpop.xlane.xlu0 %1318
      %v1320 = vsub.f32 %v1315, %v1319
      %v1321 = vmul.f32 %v1052, %v1320
      %v1322 = vadd.f32 %v1321, 0.0
      %1323 = vst.msk [vmem:[%s427] sm:$0x1] %vm454, %v1322
      %v1324 = vadd.f32 %v1274, 0.0
      %1325 = vst.msk [vmem:[%s432] sm:$0xf] %vm539, %v1324
      %v1326 = vadd.f32 %v1275, 0.0
      %s1327 = scalar_lea.vmem %s432, 4
      %1328 = vst.msk [vmem:[%s1327] sm:$0xf] %vm539, %v1326
      %v1329 = vadd.f32 %v1276, 0.0
      %s1330 = scalar_lea.vmem %s432, 8
      %1331 = vst.msk [vmem:[%s1330] sm:$0xf] %vm539, %v1329
      %v1332 = vadd.f32 %v1273, 0.0
      %vm1333 = vcmask 24576
      %1334 = vst.msk [vmem:[%s435] sm:$0x1] %vm1333, %v1332
      %1335 = vst.msk [vmem:[%s438] sm:$0x1] %vm454, %v1159
      %p1336 = scmp.lt.s32.totalorder %s22, 1
      %s1337 = scalar_select %p1336, %s22, 1
      %s1338 = scalar_lea.vmem %s7, %s1337
      %p1339 = scmp.lt.s32.totalorder %s22, 1
      %s1340 = scalar_select %p1339, %s22, 1
      %s1341 = smul.addr %s1340, 3
      %s1342 = smul.addr %s1341, 4
      %s1343 = scalar_lea.vmem %s8, %s1342
      %p1344 = scmp.lt.s32.totalorder %s22, 1
      %s1345 = scalar_select %p1344, %s22, 1
      %s1346 = scalar_lea.vmem %s9, %s1345
      %p1347 = scmp.lt.s32.totalorder %s22, 1
      %s1348 = scalar_select %p1347, %s22, 1
      %s1349 = scalar_lea.vmem %s10, %s1348
      // Predicated region
      $region49: #{meta_step.1} parent=47 // pred_check
        %p1350 = pneg %p207
      $region50: #{meta_step.1} parent=47 // pred_check_branch
        %1352 = sbr.rel (%p1350) target = $region52
      $region51: #{meta_step.1} parent=47 // pred_region
        _
      $region52: #{meta_step.1} parent=47 // pred_fallthru
        _
      // Predicated region
      $region53: #{meta_step.1} parent=47 // pred_check
        %p1353 = pneg %p233
      $region54: #{meta_step.1} parent=47 // pred_check_branch
        %1355 = sbr.rel (%p1353) target = $region56
      $region55: #{meta_step.1} parent=47 // pred_region
        _
      $region56: #{meta_step.1} parent=47 // pred_fallthru
        _
      // Predicated region
      $region57: #{meta_step.1} parent=47 // pred_check
        %p1356 = pneg %p259
      $region58: #{meta_step.1} parent=47 // pred_check_branch
        %1358 = sbr.rel (%p1356) target = $region60
      $region59: #{meta_step.1} parent=47 // pred_region
        _
      $region60: #{meta_step.1} parent=47 // pred_fallthru
        _
      // Predicated region
      $region61: #{meta_step.1} parent=47 // pred_check
        %p1359 = pneg %p285
      $region62: #{meta_step.1} parent=47 // pred_check_branch
        %1361 = sbr.rel (%p1359) target = $region64
      $region63: #{meta_step.1} parent=47 // pred_region
        _
      $region64: #{meta_step.1} parent=47 // pred_fallthru
        _
    $region48: #{meta_step.1} parent=5 // pred_fallthru
      _
    %p1362 = scmp.le.s32.totalorder 2, %s17
    // Predicated region
    $region65: #{meta_step.1} parent=5 // pred_check
      %p1363 = pneg %p1362
    $region66: #{meta_step.1} parent=5 // pred_check_branch
      %1365 = sbr.rel (%p1363) target = $region68
    $region67: #{meta_step.1} parent=5 // pred_region
      %s1366 = ssub.s32 %s17, 2
      // Predicated region
      $region69: #{meta_step.1} parent=67 // pred_check
        %p1367 = pneg %p213
      $region70: #{meta_step.1} parent=67 // pred_check_branch
        %1369 = sbr.rel (%p1367) target = $region72
      $region71: #{meta_step.1} parent=67 // pred_region
        %p1370 = scmp.lt.s32.totalorder %s23, 1
        %s1371 = scalar_select %p1370, %s23, 1
        %s1372 = scalar_lea.vmem %s7, %s1371
      $region72: #{meta_step.1} parent=67 // pred_fallthru
        _
      // Predicated region
      $region73: #{meta_step.1} parent=67 // pred_check
        %p1373 = pneg %p239
      $region74: #{meta_step.1} parent=67 // pred_check_branch
        %1375 = sbr.rel (%p1373) target = $region76
      $region75: #{meta_step.1} parent=67 // pred_region
        %p1376 = scmp.lt.s32.totalorder %s23, 1
        %s1377 = scalar_select %p1376, %s23, 1
        %s1378 = smul.addr %s1377, 3
        %s1379 = smul.addr %s1378, 4
        %s1380 = scalar_lea.vmem %s8, %s1379
      $region76: #{meta_step.1} parent=67 // pred_fallthru
        _
      // Predicated region
      $region77: #{meta_step.1} parent=67 // pred_check
        %p1381 = pneg %p265
      $region78: #{meta_step.1} parent=67 // pred_check_branch
        %1383 = sbr.rel (%p1381) target = $region80
      $region79: #{meta_step.1} parent=67 // pred_region
        %p1384 = scmp.lt.s32.totalorder %s23, 1
        %s1385 = scalar_select %p1384, %s23, 1
        %s1386 = scalar_lea.vmem %s9, %s1385
      $region80: #{meta_step.1} parent=67 // pred_fallthru
        _
      // Predicated region
      $region81: #{meta_step.1} parent=67 // pred_check
        %p1387 = pneg %p291
      $region82: #{meta_step.1} parent=67 // pred_check_branch
        %1389 = sbr.rel (%p1387) target = $region84
      $region83: #{meta_step.1} parent=67 // pred_region
        %p1390 = scmp.lt.s32.totalorder %s23, 1
        %s1391 = scalar_select %p1390, %s23, 1
        %s1392 = scalar_lea.vmem %s10, %s1391
      $region84: #{meta_step.1} parent=67 // pred_fallthru
        _
    $region68: #{meta_step.1} parent=5 // pred_fallthru
      _
  $region6: #{meta_step.1} parent=0 // loop_footer
    %s21 = sadd.s32 1, %s17
  $region7: #{meta_step.1} parent=0 // loop_footer_branch
    %16 = sbr.rel target = $region3
  $region8: #{meta_step.1} parent=0 // loop_exit
    _

</llo_original>
